<compile_context>
chip_gen: v5e
topology: v5e:2x2
jax: 0.10.0
libtpu: 0.0.40
codegen_flags: <defaults>
</compile_context>

<pallas_src>
import functools

import jax
import jax.numpy as jnp
import numpy as np
from jax.experimental import pallas as pl
from jax.experimental.pallas import tpu as pltpu


def _round_up(x, m):
    return (x + m - 1) // m * m


def _too_big_conv_head_kernel(hw_ref, x_ref, w1_ref, b1_ref, w2_ref, b2_ref,
                              w3_ref, b3_ref, alpha_ref, fcw_ref, fcb_ref,
                              out_ref, apad,
                              *, H, W, P, B_tile, Cin_p, C1_p, PADL):
    HW = H * W
    M = B_tile * HW                      # lanes per block (batch folded into lanes)
    kH, kW = H // P, W // P
    C_bc = max(Cin_p, C1_p)

    # per-lane (h, w) coordinates and the 9 conv tap masks, hoisted and shared by
    # all three convs.
    hh = hw_ref[0:1, :]                                     # (1, M) int32
    ww = hw_ref[1:2, :]
    row_ok = [(hh >= 1 - di) & (hh <= H - di) for di in range(3)]
    col_ok = [(ww >= 1 - dj) & (ww <= W - dj) for dj in range(3)]
    tap_shift, tap_mask = [], []
    for di in range(3):
        for dj in range(3):
            tap_shift.append((di - 1) * W + (dj - 1))
            tap_mask.append(jnp.broadcast_to(row_ok[di] & col_ok[dj], (C_bc, M)))

    def conv3x3(rows_in, w_ref, b_ref):
        # im2col (9*rows_in, M) from 9 lane-shifted reads of the scratch interior;
        # out-of-image taps are where-masked (so the uninitialized halo pads are
        # never consumed). The whole conv is ONE bf16 MXU matmul, f32 accumulate.
        pieces = []
        for k in range(9):
            s = tap_shift[k]
            m = tap_mask[k] if rows_in == C_bc else tap_mask[k][0:rows_in]
            shifted = apad[0:rows_in, PADL + s:PADL + s + M]
            pieces.append(jnp.where(m, shifted, 0.0))
        im2col = jnp.concatenate(pieces, axis=0).astype(jnp.bfloat16)
        y = jnp.dot(w_ref[...], im2col, preferred_element_type=jnp.float32)
        return y + b_ref[...]                               # (C1_p, M) f32

    # relu(x) -> scratch interior (PADL is 128-aligned -> aligned, unmasked stores)
    apad[0:Cin_p, PADL:PADL + M] = jnp.maximum(x_ref[...], 0.0)
    apad[0:C1_p, PADL:PADL + M] = conv3x3(Cin_p, w1_ref, b1_ref)
    apad[0:C1_p, PADL:PADL + M] = conv3x3(C1_p, w2_ref, b2_ref)
    apad[0:C1_p, PADL:PADL + M] = conv3x3(C1_p, w3_ref, b3_ref)

    # SDNPool, two-stage: pool along W (kW-1 shifted reads), write the row-pooled
    # max/sum slabs back, then pool along H (shifts i*W).  Only window-base lanes
    # (h % kH == 0, w % kW == 0) are consumed afterwards, so garbage at other
    # lanes / in the halo is never read.
    base = apad[0:C1_p, PADL:PADL + M]
    mx, sm = base, base
    for j in range(1, kW):
        sh = apad[0:C1_p, PADL + j:PADL + j + M]
        mx = jnp.maximum(mx, sh)
        sm = sm + sh
    apad[0:C1_p, PADL:PADL + M] = mx
    apad[C1_p:2 * C1_p, PADL:PADL + M] = sm
    for i in range(1, kH):
        d = i * W
        mx = jnp.maximum(mx, apad[0:C1_p, PADL + d:PADL + d + M])
        sm = sm + apad[C1_p:2 * C1_p, PADL + d:PADL + d + M]
    alpha = alpha_ref[0]
    mixed = alpha * mx + (1.0 - alpha) * (sm * (1.0 / (kH * kW)))
    apad[0:C1_p, PADL:PADL + M] = mixed

    # Batched FC: gather the P*P window-base columns of every image into ONE
    # (P*P*C1_p, B_tile) matrix (rows ordered (ph, pw, c), matching the permuted
    # FC weight), then one bf16 MXU matmul and one store of (nc, B_tile).
    feat_blocks = []
    for ph in range(P):
        for pw in range(P):
            off = PADL + ph * kH * W + pw * kW
            cols = [apad[0:C1_p, off + t * HW: off + t * HW + 1]
                    for t in range(B_tile)]
            feat_blocks.append(cols[0] if B_tile == 1
                               else jnp.concatenate(cols, axis=1))
    feats = jnp.concatenate(feat_blocks, axis=0).astype(jnp.bfloat16)
    logits = jnp.dot(fcw_ref[...], feats,
                     preferred_element_type=jnp.float32) + fcb_ref[...]
    out_ref[0] = logits                                     # (nc, B_tile)


def too_big_conv_head(x_nchw, params, pool_size=4):
    w1, b1, w2, b2, w3, b3, alpha, fc_w, fc_b = params
    N, Cin, H, W = x_nchw.shape
    C1 = w1.shape[0]
    nc = fc_w.shape[0]
    P = pool_size
    assert H % P == 0 and W % P == 0, \
        "SDNPool lowering assumes H and W divisible by pool_size"
    HW = H * W
    kH, kW = H // P, W // P

    Cin_p = _round_up(Cin, 8)
    C1_p = _round_up(C1, 8)
    C_max_p = max(Cin_p, C1_p)
    rows_apad = max(Cin_p, 2 * C1_p)          # conv activations + pooled-sum slab

    # halo pads sized from the actual maximum lane shifts, rounded to 128 lanes so
    # interior stores start on a lane-tile boundary.
    PADL = _round_up(W + 1, 128)
    PADR = _round_up(max(W + 1, (kH - 1) * W + (kW - 1)), 128)
    assert PADL >= W + 1 and PADR >= (kH - 1) * W + (kW - 1)

    # B_tile from a real per-step VMEM estimate; prefer 256-aligned lane slabs and
    # keep >= 2 grid steps when N > 1 (two v7x TensorCores via "parallel" axis).
    VMEM_BUDGET = 20 << 20

    def vmem_estimate(d):
        M = d * HW
        apad_b = rows_apad * (PADL + M + PADR) * 4
        im2col_b = 9 * C_max_p * M * (4 + 2)   # f32 pieces + bf16 cast both live
        conv_out_b = C1_p * M * 4
        x_blk_b = 2 * Cin_p * M * 4            # double-buffered input block
        return apad_b + im2col_b + conv_out_b + x_blk_b

    divisors = [d for d in range(1, N + 1) if N % d == 0]
    cands = ([d for d in divisors if (d * HW) % 256 == 0]
             or [d for d in divisors if (d * HW) % 128 == 0]
             or divisors)
    cap = max(1, N // 2)
    fitting = [d for d in cands if d <= cap and vmem_estimate(d) <= VMEM_BUDGET]
    if not fitting:
        fitting = [d for d in cands if vmem_estimate(d) <= VMEM_BUDGET] or [min(cands)]
    B_tile = max(fitting)
    M = B_tile * HW
    G = N // B_tile

    f32, bf16 = jnp.float32, jnp.bfloat16

    # input: (N, Cin, H, W) -> (Cin_p, N*H*W): channel rows, batch+spatial lanes
    x2 = jnp.transpose(x_nchw.astype(f32), (1, 0, 2, 3)).reshape(Cin, N * HW)
    x2 = jnp.pad(x2, ((0, Cin_p - Cin), (0, 0)))

    def prep_conv(w, b, cin_p):
        # (Cout, Cin, 3, 3) -> bf16 (C1_p, 9*cin_p), columns ordered (di, dj, ci)
        co, ci = w.shape[0], w.shape[1]
        wt = jnp.transpose(w.astype(f32), (0, 2, 3, 1))            # (co,3,3,ci)
        wt = jnp.pad(wt, ((0, C1_p - co), (0, 0), (0, 0), (0, cin_p - ci)))
        wf = wt.reshape(C1_p, 9 * cin_p).astype(bf16)
        bf = jnp.pad(b.astype(f32), (0, C1_p - co)).reshape(C1_p, 1)
        return wf, bf

    w1f, b1f = prep_conv(w1, b1, Cin_p)
    w2f, b2f = prep_conv(w2, b2, C1_p)
    w3f, b3f = prep_conv(w3, b3, C1_p)

    # FC weight: torch flatten order is (c, ph, pw); kernel features are (ph, pw, c_pad)
    fcw = jnp.transpose(fc_w.astype(f32).reshape(nc, C1, P, P), (0, 2, 3, 1))
    fcw = jnp.pad(fcw, ((0, 0), (0, 0), (0, 0), (0, C1_p - C1)))
    fcw = fcw.reshape(nc, P * P * C1_p).astype(bf16)
    fcb = fc_b.astype(f32).reshape(nc, 1)

    # per-lane (h, w) coordinates for the conv masks (block-local, same every step)
    p = np.arange(M, dtype=np.int32)
    local = p % HW
    hw_map = jnp.asarray(np.stack([local // W, local % W], axis=0))   # (2, M) int32

    kernel = functools.partial(
        _too_big_conv_head_kernel, H=H, W=W, P=P, B_tile=B_tile,
        Cin_p=Cin_p, C1_p=C1_p, PADL=PADL)

    grid_spec = pltpu.PrefetchScalarGridSpec(
        num_scalar_prefetch=0,
        grid=(G,),
        in_specs=[
            pl.BlockSpec((2, M), lambda n: (0, 0)),                    # hw_map
            pl.BlockSpec((Cin_p, M), lambda n: (0, n)),                # x
            pl.BlockSpec((C1_p, 9 * Cin_p), lambda n: (0, 0)),         # w1 (bf16)
            pl.BlockSpec((C1_p, 1), lambda n: (0, 0)),                 # b1
            pl.BlockSpec((C1_p, 9 * C1_p), lambda n: (0, 0)),          # w2 (bf16)
            pl.BlockSpec((C1_p, 1), lambda n: (0, 0)),                 # b2
            pl.BlockSpec((C1_p, 9 * C1_p), lambda n: (0, 0)),          # w3 (bf16)
            pl.BlockSpec((C1_p, 1), lambda n: (0, 0)),                 # b3
            pl.BlockSpec(memory_space=pltpu.MemorySpace.SMEM),         # alpha (1,)
            pl.BlockSpec((nc, P * P * C1_p), lambda n: (0, 0)),        # fc weight (bf16)
            pl.BlockSpec((nc, 1), lambda n: (0, 0)),                   # fc bias
        ],
        out_specs=pl.BlockSpec((1, nc, B_tile), lambda n: (n, 0, 0)),
        scratch_shapes=[
            # lane-padded activation scratch; the halo pads never need zeroing
            # because every read of them is either where-masked or never consumed.
            pltpu.VMEM((rows_apad, PADL + M + PADR), jnp.float32),
        ],
    )

    out = pl.pallas_call(
        kernel,
        grid_spec=grid_spec,
        out_shape=jax.ShapeDtypeStruct((G, nc, B_tile), jnp.float32),
        compiler_params=pltpu.CompilerParams(
            dimension_semantics=("parallel",),
            vmem_limit_bytes=32 * 1024 * 1024),
    )(hw_map, x2, w1f, b1f, w2f, b2f, w3f, b3f,
      alpha.astype(f32), fcw, fcb)

    return jnp.transpose(out, (0, 2, 1)).reshape(N, nc)


def reference_forward(x, params, pool_size=4):
    """Pure-JAX reference mirroring the PyTorch forward (NCHW)."""
    w1, b1, w2, b2, w3, b3, alpha, fc_w, fc_b = params
    y = jnp.maximum(x, 0.0)

    def conv(y, w, b):
        out = jax.lax.conv_general_dilated(
            y, w, window_strides=(1, 1), padding='SAME',
            dimension_numbers=('NCHW', 'OIHW', 'NCHW'))
        return out + b[None, :, None, None]

    y = conv(y, w1, b1)
    y = conv(y, w2, b2)
    y = conv(y, w3, b3)
    N, C, H, W = y.shape
    P = pool_size
    yr = y.reshape(N, C, P, H // P, P, W // P)
    mx = yr.max(axis=(3, 5))
    av = yr.mean(axis=(3, 5))
    mixed = alpha[0] * mx + (1.0 - alpha[0]) * av
    flat = mixed.reshape(N, -1)
    return flat @ fc_w.T + fc_b[None, :]


if __name__ == "__main__":
    N, Cin, H, W = 2, 8, 16, 16
    num_classes, pool_size = 10, 4
    C1 = Cin // 2

    key = jax.random.PRNGKey(0)
    ks = jax.random.split(key, 10)
    w1 = 0.1 * jax.random.normal(ks[0], (C1, Cin, 3, 3), jnp.float32)
    b1 = 0.1 * jax.random.normal(ks[1], (C1,), jnp.float32)
    w2 = 0.1 * jax.random.normal(ks[2], (C1, C1, 3, 3), jnp.float32)
    b2 = 0.1 * jax.random.normal(ks[3], (C1,), jnp.float32)
    w3 = 0.1 * jax.random.normal(ks[4], (C1, C1, 3, 3), jnp.float32)
    b3 = 0.1 * jax.random.normal(ks[5], (C1,), jnp.float32)
    alpha = jax.random.uniform(ks[6], (1,), jnp.float32)
    fc_w = 0.1 * jax.random.normal(ks[7], (num_classes, C1 * pool_size ** 2), jnp.float32)
    fc_b = 0.1 * jax.random.normal(ks[8], (num_classes,), jnp.float32)
    x = jax.random.normal(ks[9], (N, Cin, H, W), jnp.float32)
    params = (w1, b1, w2, b2, w3, b3, alpha, fc_w, fc_b)

    out = too_big_conv_head(x, params, pool_size=pool_size)
    out = jax.block_until_ready(out)
    assert out.shape == (N, num_classes)

    ref = reference_forward(x, params, pool_size=pool_size)
    # loose tolerance: conv/FC matmuls run in bf16 on the MXU (f32 accumulate)
    np.testing.assert_allclose(np.asarray(out), np.asarray(ref), rtol=2e-2, atol=2e-2)
    print("KERNEL_OK")
</pallas_src>

<mosaic_0001>
module attributes {stable_mosaic.version = 11 : i64} {
  func.func @_too_big_conv_head_kernel(%arg0: i32, %arg1: memref<2x256xi32, #tpu.memory_space<vmem>>, %arg2: memref<8x256xf32, #tpu.memory_space<vmem>>, %arg3: memref<8x72xbf16, #tpu.memory_space<vmem>>, %arg4: memref<8x1xf32, #tpu.memory_space<vmem>>, %arg5: memref<8x72xbf16, #tpu.memory_space<vmem>>, %arg6: memref<8x1xf32, #tpu.memory_space<vmem>>, %arg7: memref<8x72xbf16, #tpu.memory_space<vmem>>, %arg8: memref<8x1xf32, #tpu.memory_space<vmem>>, %arg9: memref<1xf32, #tpu.memory_space<smem>>, %arg10: memref<10x128xbf16, #tpu.memory_space<vmem>>, %arg11: memref<10x1xf32, #tpu.memory_space<vmem>>, %arg12: memref<1x10x1xf32, #tpu.memory_space<vmem>>, %arg13: memref<16x512xf32, #tpu.memory_space<vmem>>) attributes {dimension_semantics = [#tpu.dimension_semantics<parallel>], iteration_bounds = array<i64: 2>, scalar_prefetch = 0 : i64, scratch_operands = 1 : i64, tpu.core_type = #tpu.core_type<tc>, window_params = [{pipeline_mode = #tpu.pipeline_mode<synchronous>, transform_indices = @transform_0, window_bounds = array<i64: 2, 256>}, {transform_indices = @transform_1, window_bounds = array<i64: 8, 256>}, {pipeline_mode = #tpu.pipeline_mode<synchronous>, transform_indices = @transform_2, window_bounds = array<i64: 8, 72>}, {pipeline_mode = #tpu.pipeline_mode<synchronous>, transform_indices = @transform_3, window_bounds = array<i64: 8, 1>}, {pipeline_mode = #tpu.pipeline_mode<synchronous>, transform_indices = @transform_4, window_bounds = array<i64: 8, 72>}, {pipeline_mode = #tpu.pipeline_mode<synchronous>, transform_indices = @transform_5, window_bounds = array<i64: 8, 1>}, {pipeline_mode = #tpu.pipeline_mode<synchronous>, transform_indices = @transform_6, window_bounds = array<i64: 8, 72>}, {pipeline_mode = #tpu.pipeline_mode<synchronous>, transform_indices = @transform_7, window_bounds = array<i64: 8, 1>}, {transform_indices = @transform_8, window_bounds = array<i64: 1>}, {pipeline_mode = #tpu.pipeline_mode<synchronous>, transform_indices = @transform_9, window_bounds = array<i64: 10, 128>}, {pipeline_mode = #tpu.pipeline_mode<synchronous>, transform_indices = @transform_10, window_bounds = array<i64: 10, 1>}, {transform_indices = @transform_11, window_bounds = array<i64: 1, 10, 1>}]} {
    %c0 = arith.constant 0 : index
    %c0_0 = arith.constant 0 : index
    %0 = vector.load %arg1[%c0, %c0_0] : memref<2x256xi32, #tpu.memory_space<vmem>>, vector<1x256xi32>
    %c1 = arith.constant 1 : index
    %c0_1 = arith.constant 0 : index
    %1 = vector.load %arg1[%c1, %c0_1] : memref<2x256xi32, #tpu.memory_space<vmem>>, vector<1x256xi32>
    %c1_i32 = arith.constant 1 : i32
    %2 = vector.broadcast %c1_i32 : i32 to vector<1x256xi32>
    %3 = arith.cmpi sge, %0, %2 : vector<1x256xi32>
    %c16_i32 = arith.constant 16 : i32
    %4 = vector.broadcast %c16_i32 : i32 to vector<1x256xi32>
    %5 = arith.cmpi sle, %0, %4 : vector<1x256xi32>
    %6 = arith.andi %3, %5 : vector<1x256xi1>
    %c0_i32 = arith.constant 0 : i32
    %7 = vector.broadcast %c0_i32 : i32 to vector<1x256xi32>
    %8 = arith.cmpi sge, %0, %7 : vector<1x256xi32>
    %c15_i32 = arith.constant 15 : i32
    %9 = vector.broadcast %c15_i32 : i32 to vector<1x256xi32>
    %10 = arith.cmpi sle, %0, %9 : vector<1x256xi32>
    %11 = arith.andi %8, %10 : vector<1x256xi1>
    %c-1_i32 = arith.constant -1 : i32
    %12 = vector.broadcast %c-1_i32 : i32 to vector<1x256xi32>
    %13 = arith.cmpi sge, %0, %12 : vector<1x256xi32>
    %c14_i32 = arith.constant 14 : i32
    %14 = vector.broadcast %c14_i32 : i32 to vector<1x256xi32>
    %15 = arith.cmpi sle, %0, %14 : vector<1x256xi32>
    %16 = arith.andi %13, %15 : vector<1x256xi1>
    %c1_i32_2 = arith.constant 1 : i32
    %17 = vector.broadcast %c1_i32_2 : i32 to vector<1x256xi32>
    %18 = arith.cmpi sge, %1, %17 : vector<1x256xi32>
    %c16_i32_3 = arith.constant 16 : i32
    %19 = vector.broadcast %c16_i32_3 : i32 to vector<1x256xi32>
    %20 = arith.cmpi sle, %1, %19 : vector<1x256xi32>
    %21 = arith.andi %18, %20 : vector<1x256xi1>
    %c0_i32_4 = arith.constant 0 : i32
    %22 = vector.broadcast %c0_i32_4 : i32 to vector<1x256xi32>
    %23 = arith.cmpi sge, %1, %22 : vector<1x256xi32>
    %c15_i32_5 = arith.constant 15 : i32
    %24 = vector.broadcast %c15_i32_5 : i32 to vector<1x256xi32>
    %25 = arith.cmpi sle, %1, %24 : vector<1x256xi32>
    %26 = arith.andi %23, %25 : vector<1x256xi1>
    %c-1_i32_6 = arith.constant -1 : i32
    %27 = vector.broadcast %c-1_i32_6 : i32 to vector<1x256xi32>
    %28 = arith.cmpi sge, %1, %27 : vector<1x256xi32>
    %c14_i32_7 = arith.constant 14 : i32
    %29 = vector.broadcast %c14_i32_7 : i32 to vector<1x256xi32>
    %30 = arith.cmpi sle, %1, %29 : vector<1x256xi32>
    %31 = arith.andi %28, %30 : vector<1x256xi1>
    %32 = arith.andi %6, %21 : vector<1x256xi1>
    %33 = vector.shape_cast %32 : vector<1x256xi1> to vector<1x256xi1>
    %34 = vector.broadcast %33 : vector<1x256xi1> to vector<8x256xi1>
    %35 = arith.andi %6, %26 : vector<1x256xi1>
    %36 = vector.shape_cast %35 : vector<1x256xi1> to vector<1x256xi1>
    %37 = vector.broadcast %36 : vector<1x256xi1> to vector<8x256xi1>
    %38 = arith.andi %6, %31 : vector<1x256xi1>
    %39 = vector.shape_cast %38 : vector<1x256xi1> to vector<1x256xi1>
    %40 = vector.broadcast %39 : vector<1x256xi1> to vector<8x256xi1>
    %41 = arith.andi %11, %21 : vector<1x256xi1>
    %42 = vector.shape_cast %41 : vector<1x256xi1> to vector<1x256xi1>
    %43 = vector.broadcast %42 : vector<1x256xi1> to vector<8x256xi1>
    %44 = arith.andi %11, %26 : vector<1x256xi1>
    %45 = vector.shape_cast %44 : vector<1x256xi1> to vector<1x256xi1>
    %46 = vector.broadcast %45 : vector<1x256xi1> to vector<8x256xi1>
    %47 = arith.andi %11, %31 : vector<1x256xi1>
    %48 = vector.shape_cast %47 : vector<1x256xi1> to vector<1x256xi1>
    %49 = vector.broadcast %48 : vector<1x256xi1> to vector<8x256xi1>
    %50 = arith.andi %16, %21 : vector<1x256xi1>
    %51 = vector.shape_cast %50 : vector<1x256xi1> to vector<1x256xi1>
    %52 = vector.broadcast %51 : vector<1x256xi1> to vector<8x256xi1>
    %53 = arith.andi %16, %26 : vector<1x256xi1>
    %54 = vector.shape_cast %53 : vector<1x256xi1> to vector<1x256xi1>
    %55 = vector.broadcast %54 : vector<1x256xi1> to vector<8x256xi1>
    %56 = arith.andi %16, %31 : vector<1x256xi1>
    %57 = vector.shape_cast %56 : vector<1x256xi1> to vector<1x256xi1>
    %58 = vector.broadcast %57 : vector<1x256xi1> to vector<8x256xi1>
    %c0_8 = arith.constant 0 : index
    %c0_9 = arith.constant 0 : index
    %59 = vector.load %arg2[%c0_8, %c0_9] : memref<8x256xf32, #tpu.memory_space<vmem>>, vector<8x256xf32>
    %cst = arith.constant 0.000000e+00 : f32
    %60 = vector.broadcast %cst : f32 to vector<8x256xf32>
    %61 = arith.maximumf %59, %60 : vector<8x256xf32>
    %c0_10 = arith.constant 0 : index
    %c128 = arith.constant 128 : index
    %62 = vector.load %arg13[%c0_10, %c128] : memref<16x512xf32, #tpu.memory_space<vmem>>, vector<8x256xf32>
    tpu.vector_store %arg13[%c0_10, %c128], %61 {strides = array<i32>} : memref<16x512xf32, #tpu.memory_space<vmem>>, vector<8x256xf32>,
    %c0_11 = arith.constant 0 : index
    %c111 = arith.constant 111 : index
    %63 = vector.load %arg13[%c0_11, %c111] : memref<16x512xf32, #tpu.memory_space<vmem>>, vector<8x256xf32>
    %cst_12 = arith.constant 0.000000e+00 : f32
    %64 = vector.broadcast %cst_12 : f32 to vector<8x256xf32>
    %65 = arith.select %34, %63, %64 : vector<8x256xi1>, vector<8x256xf32>
    %c0_13 = arith.constant 0 : index
    %c112 = arith.constant 112 : index
    %66 = vector.load %arg13[%c0_13, %c112] : memref<16x512xf32, #tpu.memory_space<vmem>>, vector<8x256xf32>
    %cst_14 = arith.constant 0.000000e+00 : f32
    %67 = vector.broadcast %cst_14 : f32 to vector<8x256xf32>
    %68 = arith.select %37, %66, %67 : vector<8x256xi1>, vector<8x256xf32>
    %c0_15 = arith.constant 0 : index
    %c113 = arith.constant 113 : index
    %69 = vector.load %arg13[%c0_15, %c113] : memref<16x512xf32, #tpu.memory_space<vmem>>, vector<8x256xf32>
    %cst_16 = arith.constant 0.000000e+00 : f32
    %70 = vector.broadcast %cst_16 : f32 to vector<8x256xf32>
    %71 = arith.select %40, %69, %70 : vector<8x256xi1>, vector<8x256xf32>
    %c0_17 = arith.constant 0 : index
    %c127 = arith.constant 127 : index
    %72 = vector.load %arg13[%c0_17, %c127] : memref<16x512xf32, #tpu.memory_space<vmem>>, vector<8x256xf32>
    %cst_18 = arith.constant 0.000000e+00 : f32
    %73 = vector.broadcast %cst_18 : f32 to vector<8x256xf32>
    %74 = arith.select %43, %72, %73 : vector<8x256xi1>, vector<8x256xf32>
    %c0_19 = arith.constant 0 : index
    %c128_20 = arith.constant 128 : index
    %75 = vector.load %arg13[%c0_19, %c128_20] : memref<16x512xf32, #tpu.memory_space<vmem>>, vector<8x256xf32>
    %cst_21 = arith.constant 0.000000e+00 : f32
    %76 = vector.broadcast %cst_21 : f32 to vector<8x256xf32>
    %77 = arith.select %46, %75, %76 : vector<8x256xi1>, vector<8x256xf32>
    %c0_22 = arith.constant 0 : index
    %c129 = arith.constant 129 : index
    %78 = vector.load %arg13[%c0_22, %c129] : memref<16x512xf32, #tpu.memory_space<vmem>>, vector<8x256xf32>
    %cst_23 = arith.constant 0.000000e+00 : f32
    %79 = vector.broadcast %cst_23 : f32 to vector<8x256xf32>
    %80 = arith.select %49, %78, %79 : vector<8x256xi1>, vector<8x256xf32>
    %c0_24 = arith.constant 0 : index
    %c143 = arith.constant 143 : index
    %81 = vector.load %arg13[%c0_24, %c143] : memref<16x512xf32, #tpu.memory_space<vmem>>, vector<8x256xf32>
    %cst_25 = arith.constant 0.000000e+00 : f32
    %82 = vector.broadcast %cst_25 : f32 to vector<8x256xf32>
    %83 = arith.select %52, %81, %82 : vector<8x256xi1>, vector<8x256xf32>
    %c0_26 = arith.constant 0 : index
    %c144 = arith.constant 144 : index
    %84 = vector.load %arg13[%c0_26, %c144] : memref<16x512xf32, #tpu.memory_space<vmem>>, vector<8x256xf32>
    %cst_27 = arith.constant 0.000000e+00 : f32
    %85 = vector.broadcast %cst_27 : f32 to vector<8x256xf32>
    %86 = arith.select %55, %84, %85 : vector<8x256xi1>, vector<8x256xf32>
    %c0_28 = arith.constant 0 : index
    %c145 = arith.constant 145 : index
    %87 = vector.load %arg13[%c0_28, %c145] : memref<16x512xf32, #tpu.memory_space<vmem>>, vector<8x256xf32>
    %cst_29 = arith.constant 0.000000e+00 : f32
    %88 = vector.broadcast %cst_29 : f32 to vector<8x256xf32>
    %89 = arith.select %58, %87, %88 : vector<8x256xi1>, vector<8x256xf32>
    %90 = tpu.concatenate %65, %68, %71, %74, %77, %80, %83, %86, %89 in 0 : vector<8x256xf32>, vector<8x256xf32>, vector<8x256xf32>, vector<8x256xf32>, vector<8x256xf32>, vector<8x256xf32>, vector<8x256xf32>, vector<8x256xf32>, vector<8x256xf32> -> vector<72x256xf32>
    %91 = arith.truncf %90 : vector<72x256xf32> to vector<72x256xbf16>
    %c0_30 = arith.constant 0 : index
    %c0_31 = arith.constant 0 : index
    %92 = vector.load %arg3[%c0_30, %c0_31] : memref<8x72xbf16, #tpu.memory_space<vmem>>, vector<8x72xbf16>
    %cst_32 = arith.constant dense<0.000000e+00> : vector<8x256xf32>
    %93 = tpu.matmul %92, %91, %cst_32 {dimension_numbers = #tpu.dot_dimension_numbers<[1], [0], [0], [1], [0, 0, 1, 1], [], []>} : vector<8x72xbf16>, vector<72x256xbf16>, vector<8x256xf32> -> vector<8x256xf32>
    %c0_33 = arith.constant 0 : index
    %c0_34 = arith.constant 0 : index
    %94 = vector.load %arg4[%c0_33, %c0_34] : memref<8x1xf32, #tpu.memory_space<vmem>>, vector<8x1xf32>
    %95 = vector.broadcast %94 : vector<8x1xf32> to vector<8x256xf32>
    %96 = arith.addf %93, %95 : vector<8x256xf32>
    %c0_35 = arith.constant 0 : index
    %c128_36 = arith.constant 128 : index
    %97 = vector.load %arg13[%c0_35, %c128_36] : memref<16x512xf32, #tpu.memory_space<vmem>>, vector<8x256xf32>
    tpu.vector_store %arg13[%c0_35, %c128_36], %96 {strides = array<i32>} : memref<16x512xf32, #tpu.memory_space<vmem>>, vector<8x256xf32>,
    %c0_37 = arith.constant 0 : index
    %c111_38 = arith.constant 111 : index
    %98 = vector.load %arg13[%c0_37, %c111_38] : memref<16x512xf32, #tpu.memory_space<vmem>>, vector<8x256xf32>
    %cst_39 = arith.constant 0.000000e+00 : f32
    %99 = vector.broadcast %cst_39 : f32 to vector<8x256xf32>
    %100 = arith.select %34, %98, %99 : vector<8x256xi1>, vector<8x256xf32>
    %c0_40 = arith.constant 0 : index
    %c112_41 = arith.constant 112 : index
    %101 = vector.load %arg13[%c0_40, %c112_41] : memref<16x512xf32, #tpu.memory_space<vmem>>, vector<8x256xf32>
    %cst_42 = arith.constant 0.000000e+00 : f32
    %102 = vector.broadcast %cst_42 : f32 to vector<8x256xf32>
    %103 = arith.select %37, %101, %102 : vector<8x256xi1>, vector<8x256xf32>
    %c0_43 = arith.constant 0 : index
    %c113_44 = arith.constant 113 : index
    %104 = vector.load %arg13[%c0_43, %c113_44] : memref<16x512xf32, #tpu.memory_space<vmem>>, vector<8x256xf32>
    %cst_45 = arith.constant 0.000000e+00 : f32
    %105 = vector.broadcast %cst_45 : f32 to vector<8x256xf32>
    %106 = arith.select %40, %104, %105 : vector<8x256xi1>, vector<8x256xf32>
    %c0_46 = arith.constant 0 : index
    %c127_47 = arith.constant 127 : index
    %107 = vector.load %arg13[%c0_46, %c127_47] : memref<16x512xf32, #tpu.memory_space<vmem>>, vector<8x256xf32>
    %cst_48 = arith.constant 0.000000e+00 : f32
    %108 = vector.broadcast %cst_48 : f32 to vector<8x256xf32>
    %109 = arith.select %43, %107, %108 : vector<8x256xi1>, vector<8x256xf32>
    %c0_49 = arith.constant 0 : index
    %c128_50 = arith.constant 128 : index
    %110 = vector.load %arg13[%c0_49, %c128_50] : memref<16x512xf32, #tpu.memory_space<vmem>>, vector<8x256xf32>
    %cst_51 = arith.constant 0.000000e+00 : f32
    %111 = vector.broadcast %cst_51 : f32 to vector<8x256xf32>
    %112 = arith.select %46, %110, %111 : vector<8x256xi1>, vector<8x256xf32>
    %c0_52 = arith.constant 0 : index
    %c129_53 = arith.constant 129 : index
    %113 = vector.load %arg13[%c0_52, %c129_53] : memref<16x512xf32, #tpu.memory_space<vmem>>, vector<8x256xf32>
    %cst_54 = arith.constant 0.000000e+00 : f32
    %114 = vector.broadcast %cst_54 : f32 to vector<8x256xf32>
    %115 = arith.select %49, %113, %114 : vector<8x256xi1>, vector<8x256xf32>
    %c0_55 = arith.constant 0 : index
    %c143_56 = arith.constant 143 : index
    %116 = vector.load %arg13[%c0_55, %c143_56] : memref<16x512xf32, #tpu.memory_space<vmem>>, vector<8x256xf32>
    %cst_57 = arith.constant 0.000000e+00 : f32
    %117 = vector.broadcast %cst_57 : f32 to vector<8x256xf32>
    %118 = arith.select %52, %116, %117 : vector<8x256xi1>, vector<8x256xf32>
    %c0_58 = arith.constant 0 : index
    %c144_59 = arith.constant 144 : index
    %119 = vector.load %arg13[%c0_58, %c144_59] : memref<16x512xf32, #tpu.memory_space<vmem>>, vector<8x256xf32>
    %cst_60 = arith.constant 0.000000e+00 : f32
    %120 = vector.broadcast %cst_60 : f32 to vector<8x256xf32>
    %121 = arith.select %55, %119, %120 : vector<8x256xi1>, vector<8x256xf32>
    %c0_61 = arith.constant 0 : index
    %c145_62 = arith.constant 145 : index
    %122 = vector.load %arg13[%c0_61, %c145_62] : memref<16x512xf32, #tpu.memory_space<vmem>>, vector<8x256xf32>
    %cst_63 = arith.constant 0.000000e+00 : f32
    %123 = vector.broadcast %cst_63 : f32 to vector<8x256xf32>
    %124 = arith.select %58, %122, %123 : vector<8x256xi1>, vector<8x256xf32>
    %125 = tpu.concatenate %100, %103, %106, %109, %112, %115, %118, %121, %124 in 0 : vector<8x256xf32>, vector<8x256xf32>, vector<8x256xf32>, vector<8x256xf32>, vector<8x256xf32>, vector<8x256xf32>, vector<8x256xf32>, vector<8x256xf32>, vector<8x256xf32> -> vector<72x256xf32>
    %126 = arith.truncf %125 : vector<72x256xf32> to vector<72x256xbf16>
    %c0_64 = arith.constant 0 : index
    %c0_65 = arith.constant 0 : index
    %127 = vector.load %arg5[%c0_64, %c0_65] : memref<8x72xbf16, #tpu.memory_space<vmem>>, vector<8x72xbf16>
    %cst_66 = arith.constant dense<0.000000e+00> : vector<8x256xf32>
    %128 = tpu.matmul %127, %126, %cst_66 {dimension_numbers = #tpu.dot_dimension_numbers<[1], [0], [0], [1], [0, 0, 1, 1], [], []>} : vector<8x72xbf16>, vector<72x256xbf16>, vector<8x256xf32> -> vector<8x256xf32>
    %c0_67 = arith.constant 0 : index
    %c0_68 = arith.constant 0 : index
    %129 = vector.load %arg6[%c0_67, %c0_68] : memref<8x1xf32, #tpu.memory_space<vmem>>, vector<8x1xf32>
    %130 = vector.broadcast %129 : vector<8x1xf32> to vector<8x256xf32>
    %131 = arith.addf %128, %130 : vector<8x256xf32>
    %c0_69 = arith.constant 0 : index
    %c128_70 = arith.constant 128 : index
    %132 = vector.load %arg13[%c0_69, %c128_70] : memref<16x512xf32, #tpu.memory_space<vmem>>, vector<8x256xf32>
    tpu.vector_store %arg13[%c0_69, %c128_70], %131 {strides = array<i32>} : memref<16x512xf32, #tpu.memory_space<vmem>>, vector<8x256xf32>,
    %c0_71 = arith.constant 0 : index
    %c111_72 = arith.constant 111 : index
    %133 = vector.load %arg13[%c0_71, %c111_72] : memref<16x512xf32, #tpu.memory_space<vmem>>, vector<8x256xf32>
    %cst_73 = arith.constant 0.000000e+00 : f32
    %134 = vector.broadcast %cst_73 : f32 to vector<8x256xf32>
    %135 = arith.select %34, %133, %134 : vector<8x256xi1>, vector<8x256xf32>
    %c0_74 = arith.constant 0 : index
    %c112_75 = arith.constant 112 : index
    %136 = vector.load %arg13[%c0_74, %c112_75] : memref<16x512xf32, #tpu.memory_space<vmem>>, vector<8x256xf32>
    %cst_76 = arith.constant 0.000000e+00 : f32
    %137 = vector.broadcast %cst_76 : f32 to vector<8x256xf32>
    %138 = arith.select %37, %136, %137 : vector<8x256xi1>, vector<8x256xf32>
    %c0_77 = arith.constant 0 : index
    %c113_78 = arith.constant 113 : index
    %139 = vector.load %arg13[%c0_77, %c113_78] : memref<16x512xf32, #tpu.memory_space<vmem>>, vector<8x256xf32>
    %cst_79 = arith.constant 0.000000e+00 : f32
    %140 = vector.broadcast %cst_79 : f32 to vector<8x256xf32>
    %141 = arith.select %40, %139, %140 : vector<8x256xi1>, vector<8x256xf32>
    %c0_80 = arith.constant 0 : index
    %c127_81 = arith.constant 127 : index
    %142 = vector.load %arg13[%c0_80, %c127_81] : memref<16x512xf32, #tpu.memory_space<vmem>>, vector<8x256xf32>
    %cst_82 = arith.constant 0.000000e+00 : f32
    %143 = vector.broadcast %cst_82 : f32 to vector<8x256xf32>
    %144 = arith.select %43, %142, %143 : vector<8x256xi1>, vector<8x256xf32>
    %c0_83 = arith.constant 0 : index
    %c128_84 = arith.constant 128 : index
    %145 = vector.load %arg13[%c0_83, %c128_84] : memref<16x512xf32, #tpu.memory_space<vmem>>, vector<8x256xf32>
    %cst_85 = arith.constant 0.000000e+00 : f32
    %146 = vector.broadcast %cst_85 : f32 to vector<8x256xf32>
    %147 = arith.select %46, %145, %146 : vector<8x256xi1>, vector<8x256xf32>
    %c0_86 = arith.constant 0 : index
    %c129_87 = arith.constant 129 : index
    %148 = vector.load %arg13[%c0_86, %c129_87] : memref<16x512xf32, #tpu.memory_space<vmem>>, vector<8x256xf32>
    %cst_88 = arith.constant 0.000000e+00 : f32
    %149 = vector.broadcast %cst_88 : f32 to vector<8x256xf32>
    %150 = arith.select %49, %148, %149 : vector<8x256xi1>, vector<8x256xf32>
    %c0_89 = arith.constant 0 : index
    %c143_90 = arith.constant 143 : index
    %151 = vector.load %arg13[%c0_89, %c143_90] : memref<16x512xf32, #tpu.memory_space<vmem>>, vector<8x256xf32>
    %cst_91 = arith.constant 0.000000e+00 : f32
    %152 = vector.broadcast %cst_91 : f32 to vector<8x256xf32>
    %153 = arith.select %52, %151, %152 : vector<8x256xi1>, vector<8x256xf32>
    %c0_92 = arith.constant 0 : index
    %c144_93 = arith.constant 144 : index
    %154 = vector.load %arg13[%c0_92, %c144_93] : memref<16x512xf32, #tpu.memory_space<vmem>>, vector<8x256xf32>
    %cst_94 = arith.constant 0.000000e+00 : f32
    %155 = vector.broadcast %cst_94 : f32 to vector<8x256xf32>
    %156 = arith.select %55, %154, %155 : vector<8x256xi1>, vector<8x256xf32>
    %c0_95 = arith.constant 0 : index
    %c145_96 = arith.constant 145 : index
    %157 = vector.load %arg13[%c0_95, %c145_96] : memref<16x512xf32, #tpu.memory_space<vmem>>, vector<8x256xf32>
    %cst_97 = arith.constant 0.000000e+00 : f32
    %158 = vector.broadcast %cst_97 : f32 to vector<8x256xf32>
    %159 = arith.select %58, %157, %158 : vector<8x256xi1>, vector<8x256xf32>
    %160 = tpu.concatenate %135, %138, %141, %144, %147, %150, %153, %156, %159 in 0 : vector<8x256xf32>, vector<8x256xf32>, vector<8x256xf32>, vector<8x256xf32>, vector<8x256xf32>, vector<8x256xf32>, vector<8x256xf32>, vector<8x256xf32>, vector<8x256xf32> -> vector<72x256xf32>
    %161 = arith.truncf %160 : vector<72x256xf32> to vector<72x256xbf16>
    %c0_98 = arith.constant 0 : index
    %c0_99 = arith.constant 0 : index
    %162 = vector.load %arg7[%c0_98, %c0_99] : memref<8x72xbf16, #tpu.memory_space<vmem>>, vector<8x72xbf16>
    %cst_100 = arith.constant dense<0.000000e+00> : vector<8x256xf32>
    %163 = tpu.matmul %162, %161, %cst_100 {dimension_numbers = #tpu.dot_dimension_numbers<[1], [0], [0], [1], [0, 0, 1, 1], [], []>} : vector<8x72xbf16>, vector<72x256xbf16>, vector<8x256xf32> -> vector<8x256xf32>
    %c0_101 = arith.constant 0 : index
    %c0_102 = arith.constant 0 : index
    %164 = vector.load %arg8[%c0_101, %c0_102] : memref<8x1xf32, #tpu.memory_space<vmem>>, vector<8x1xf32>
    %165 = vector.broadcast %164 : vector<8x1xf32> to vector<8x256xf32>
    %166 = arith.addf %163, %165 : vector<8x256xf32>
    %c0_103 = arith.constant 0 : index
    %c128_104 = arith.constant 128 : index
    %167 = vector.load %arg13[%c0_103, %c128_104] : memref<16x512xf32, #tpu.memory_space<vmem>>, vector<8x256xf32>
    tpu.vector_store %arg13[%c0_103, %c128_104], %166 {strides = array<i32>} : memref<16x512xf32, #tpu.memory_space<vmem>>, vector<8x256xf32>,
    %c0_105 = arith.constant 0 : index
    %c128_106 = arith.constant 128 : index
    %168 = vector.load %arg13[%c0_105, %c128_106] : memref<16x512xf32, #tpu.memory_space<vmem>>, vector<8x256xf32>
    %c0_107 = arith.constant 0 : index
    %c129_108 = arith.constant 129 : index
    %169 = vector.load %arg13[%c0_107, %c129_108] : memref<16x512xf32, #tpu.memory_space<vmem>>, vector<8x256xf32>
    %170 = arith.maximumf %168, %169 : vector<8x256xf32>
    %171 = arith.addf %168, %169 : vector<8x256xf32>
    %c0_109 = arith.constant 0 : index
    %c130 = arith.constant 130 : index
    %172 = vector.load %arg13[%c0_109, %c130] : memref<16x512xf32, #tpu.memory_space<vmem>>, vector<8x256xf32>
    %173 = arith.maximumf %170, %172 : vector<8x256xf32>
    %174 = arith.addf %171, %172 : vector<8x256xf32>
    %c0_110 = arith.constant 0 : index
    %c131 = arith.constant 131 : index
    %175 = vector.load %arg13[%c0_110, %c131] : memref<16x512xf32, #tpu.memory_space<vmem>>, vector<8x256xf32>
    %176 = arith.maximumf %173, %175 : vector<8x256xf32>
    %177 = arith.addf %174, %175 : vector<8x256xf32>
    %c0_111 = arith.constant 0 : index
    %c128_112 = arith.constant 128 : index
    %178 = vector.load %arg13[%c0_111, %c128_112] : memref<16x512xf32, #tpu.memory_space<vmem>>, vector<8x256xf32>
    tpu.vector_store %arg13[%c0_111, %c128_112], %176 {strides = array<i32>} : memref<16x512xf32, #tpu.memory_space<vmem>>, vector<8x256xf32>,
    %c8 = arith.constant 8 : index
    %c128_113 = arith.constant 128 : index
    %179 = vector.load %arg13[%c8, %c128_113] : memref<16x512xf32, #tpu.memory_space<vmem>>, vector<8x256xf32>
    tpu.vector_store %arg13[%c8, %c128_113], %177 {strides = array<i32>} : memref<16x512xf32, #tpu.memory_space<vmem>>, vector<8x256xf32>,
    %c0_114 = arith.constant 0 : index
    %c144_115 = arith.constant 144 : index
    %180 = vector.load %arg13[%c0_114, %c144_115] : memref<16x512xf32, #tpu.memory_space<vmem>>, vector<8x256xf32>
    %181 = arith.maximumf %176, %180 : vector<8x256xf32>
    %c8_116 = arith.constant 8 : index
    %c144_117 = arith.constant 144 : index
    %182 = vector.load %arg13[%c8_116, %c144_117] : memref<16x512xf32, #tpu.memory_space<vmem>>, vector<8x256xf32>
    %183 = arith.addf %177, %182 : vector<8x256xf32>
    %c0_118 = arith.constant 0 : index
    %c160 = arith.constant 160 : index
    %184 = vector.load %arg13[%c0_118, %c160] : memref<16x512xf32, #tpu.memory_space<vmem>>, vector<8x256xf32>
    %185 = arith.maximumf %181, %184 : vector<8x256xf32>
    %c8_119 = arith.constant 8 : index
    %c160_120 = arith.constant 160 : index
    %186 = vector.load %arg13[%c8_119, %c160_120] : memref<16x512xf32, #tpu.memory_space<vmem>>, vector<8x256xf32>
    %187 = arith.addf %183, %186 : vector<8x256xf32>
    %c0_121 = arith.constant 0 : index
    %c176 = arith.constant 176 : index
    %188 = vector.load %arg13[%c0_121, %c176] : memref<16x512xf32, #tpu.memory_space<vmem>>, vector<8x256xf32>
    %189 = arith.maximumf %185, %188 : vector<8x256xf32>
    %c8_122 = arith.constant 8 : index
    %c176_123 = arith.constant 176 : index
    %190 = vector.load %arg13[%c8_122, %c176_123] : memref<16x512xf32, #tpu.memory_space<vmem>>, vector<8x256xf32>
    %191 = arith.addf %187, %190 : vector<8x256xf32>
    %c0_124 = arith.constant 0 : index
    %192 = memref.load %arg9[%c0_124] : memref<1xf32, #tpu.memory_space<smem>>
    %193 = vector.broadcast %192 : f32 to vector<8x256xf32>
    %194 = arith.mulf %193, %189 : vector<8x256xf32>
    %cst_125 = arith.constant 1.000000e+00 : f32
    %195 = arith.subf %cst_125, %192 : f32
    %cst_126 = arith.constant 6.250000e-02 : f32
    %196 = vector.broadcast %cst_126 : f32 to vector<8x256xf32>
    %197 = arith.mulf %191, %196 : vector<8x256xf32>
    %198 = vector.broadcast %195 : f32 to vector<8x256xf32>
    %199 = arith.mulf %198, %197 : vector<8x256xf32>
    %200 = arith.addf %194, %199 : vector<8x256xf32>
    %c0_127 = arith.constant 0 : index
    %c128_128 = arith.constant 128 : index
    %201 = vector.load %arg13[%c0_127, %c128_128] : memref<16x512xf32, #tpu.memory_space<vmem>>, vector<8x256xf32>
    tpu.vector_store %arg13[%c0_127, %c128_128], %200 {strides = array<i32>} : memref<16x512xf32, #tpu.memory_space<vmem>>, vector<8x256xf32>,
    %c0_129 = arith.constant 0 : index
    %c128_130 = arith.constant 128 : index
    %202 = vector.load %arg13[%c0_129, %c128_130] : memref<16x512xf32, #tpu.memory_space<vmem>>, vector<8x1xf32>
    %c0_131 = arith.constant 0 : index
    %c132 = arith.constant 132 : index
    %203 = vector.load %arg13[%c0_131, %c132] : memref<16x512xf32, #tpu.memory_space<vmem>>, vector<8x1xf32>
    %c0_132 = arith.constant 0 : index
    %c136 = arith.constant 136 : index
    %204 = vector.load %arg13[%c0_132, %c136] : memref<16x512xf32, #tpu.memory_space<vmem>>, vector<8x1xf32>
    %c0_133 = arith.constant 0 : index
    %c140 = arith.constant 140 : index
    %205 = vector.load %arg13[%c0_133, %c140] : memref<16x512xf32, #tpu.memory_space<vmem>>, vector<8x1xf32>
    %c0_134 = arith.constant 0 : index
    %c192 = arith.constant 192 : index
    %206 = vector.load %arg13[%c0_134, %c192] : memref<16x512xf32, #tpu.memory_space<vmem>>, vector<8x1xf32>
    %c0_135 = arith.constant 0 : index
    %c196 = arith.constant 196 : index
    %207 = vector.load %arg13[%c0_135, %c196] : memref<16x512xf32, #tpu.memory_space<vmem>>, vector<8x1xf32>
    %c0_136 = arith.constant 0 : index
    %c200 = arith.constant 200 : index
    %208 = vector.load %arg13[%c0_136, %c200] : memref<16x512xf32, #tpu.memory_space<vmem>>, vector<8x1xf32>
    %c0_137 = arith.constant 0 : index
    %c204 = arith.constant 204 : index
    %209 = vector.load %arg13[%c0_137, %c204] : memref<16x512xf32, #tpu.memory_space<vmem>>, vector<8x1xf32>
    %c0_138 = arith.constant 0 : index
    %c256 = arith.constant 256 : index
    %210 = vector.load %arg13[%c0_138, %c256] : memref<16x512xf32, #tpu.memory_space<vmem>>, vector<8x1xf32>
    %c0_139 = arith.constant 0 : index
    %c260 = arith.constant 260 : index
    %211 = vector.load %arg13[%c0_139, %c260] : memref<16x512xf32, #tpu.memory_space<vmem>>, vector<8x1xf32>
    %c0_140 = arith.constant 0 : index
    %c264 = arith.constant 264 : index
    %212 = vector.load %arg13[%c0_140, %c264] : memref<16x512xf32, #tpu.memory_space<vmem>>, vector<8x1xf32>
    %c0_141 = arith.constant 0 : index
    %c268 = arith.constant 268 : index
    %213 = vector.load %arg13[%c0_141, %c268] : memref<16x512xf32, #tpu.memory_space<vmem>>, vector<8x1xf32>
    %c0_142 = arith.constant 0 : index
    %c320 = arith.constant 320 : index
    %214 = vector.load %arg13[%c0_142, %c320] : memref<16x512xf32, #tpu.memory_space<vmem>>, vector<8x1xf32>
    %c0_143 = arith.constant 0 : index
    %c324 = arith.constant 324 : index
    %215 = vector.load %arg13[%c0_143, %c324] : memref<16x512xf32, #tpu.memory_space<vmem>>, vector<8x1xf32>
    %c0_144 = arith.constant 0 : index
    %c328 = arith.constant 328 : index
    %216 = vector.load %arg13[%c0_144, %c328] : memref<16x512xf32, #tpu.memory_space<vmem>>, vector<8x1xf32>
    %c0_145 = arith.constant 0 : index
    %c332 = arith.constant 332 : index
    %217 = vector.load %arg13[%c0_145, %c332] : memref<16x512xf32, #tpu.memory_space<vmem>>, vector<8x1xf32>
    %218 = tpu.concatenate %202, %203, %204, %205, %206, %207, %208, %209, %210, %211, %212, %213, %214, %215, %216, %217 in 0 : vector<8x1xf32>, vector<8x1xf32>, vector<8x1xf32>, vector<8x1xf32>, vector<8x1xf32>, vector<8x1xf32>, vector<8x1xf32>, vector<8x1xf32>, vector<8x1xf32>, vector<8x1xf32>, vector<8x1xf32>, vector<8x1xf32>, vector<8x1xf32>, vector<8x1xf32>, vector<8x1xf32>, vector<8x1xf32> -> vector<128x1xf32>
    %219 = arith.truncf %218 : vector<128x1xf32> to vector<128x1xbf16>
    %c0_146 = arith.constant 0 : index
    %c0_147 = arith.constant 0 : index
    %220 = vector.load %arg10[%c0_146, %c0_147] : memref<10x128xbf16, #tpu.memory_space<vmem>>, vector<10x128xbf16>
    %cst_148 = arith.constant dense<0.000000e+00> : vector<10x1xf32>
    %221 = tpu.matmul %220, %219, %cst_148 {dimension_numbers = #tpu.dot_dimension_numbers<[1], [0], [0], [1], [0, 0, 1, 1], [], []>} : vector<10x128xbf16>, vector<128x1xbf16>, vector<10x1xf32> -> vector<10x1xf32>
    %c0_149 = arith.constant 0 : index
    %c0_150 = arith.constant 0 : index
    %222 = vector.load %arg11[%c0_149, %c0_150] : memref<10x1xf32, #tpu.memory_space<vmem>>, vector<10x1xf32>
    %223 = arith.addf %221, %222 : vector<10x1xf32>
    %c0_151 = arith.constant 0 : index
    %c0_152 = arith.constant 0 : index
    %c0_153 = arith.constant 0 : index
    %224 = vector.load %arg12[%c0_151, %c0_152, %c0_153] : memref<1x10x1xf32, #tpu.memory_space<vmem>>, vector<1x10x1xf32>
    %225 = vector.shape_cast %224 : vector<1x10x1xf32> to vector<10x1xf32>
    %226 = vector.shape_cast %223 : vector<10x1xf32> to vector<1x10x1xf32>
    tpu.vector_store %arg12[%c0_151, %c0_152, %c0_153], %226 {strides = array<i32>} : memref<1x10x1xf32, #tpu.memory_space<vmem>>, vector<1x10x1xf32>,
    return
  }
  func.func @transform_0(%arg0: i32) -> (i32, i32) {
    %c0_i32 = arith.constant 0 : i32
    %c0_i32_0 = arith.constant 0 : i32
    %c0_i32_1 = arith.constant 0 : i32
    return %c0_i32, %c0_i32_0 : i32, i32
  }
  func.func @transform_1(%arg0: i32) -> (i32, i32) {
    %c0_i32 = arith.constant 0 : i32
    %c0_i32_0 = arith.constant 0 : i32
    return %c0_i32, %arg0 : i32, i32
  }
  func.func @transform_2(%arg0: i32) -> (i32, i32) {
    %c0_i32 = arith.constant 0 : i32
    %c0_i32_0 = arith.constant 0 : i32
    %c0_i32_1 = arith.constant 0 : i32
    return %c0_i32, %c0_i32_0 : i32, i32
  }
  func.func @transform_3(%arg0: i32) -> (i32, i32) {
    %c0_i32 = arith.constant 0 : i32
    %c0_i32_0 = arith.constant 0 : i32
    %c0_i32_1 = arith.constant 0 : i32
    return %c0_i32, %c0_i32_0 : i32, i32
  }
  func.func @transform_4(%arg0: i32) -> (i32, i32) {
    %c0_i32 = arith.constant 0 : i32
    %c0_i32_0 = arith.constant 0 : i32
    %c0_i32_1 = arith.constant 0 : i32
    return %c0_i32, %c0_i32_0 : i32, i32
  }
  func.func @transform_5(%arg0: i32) -> (i32, i32) {
    %c0_i32 = arith.constant 0 : i32
    %c0_i32_0 = arith.constant 0 : i32
    %c0_i32_1 = arith.constant 0 : i32
    return %c0_i32, %c0_i32_0 : i32, i32
  }
  func.func @transform_6(%arg0: i32) -> (i32, i32) {
    %c0_i32 = arith.constant 0 : i32
    %c0_i32_0 = arith.constant 0 : i32
    %c0_i32_1 = arith.constant 0 : i32
    return %c0_i32, %c0_i32_0 : i32, i32
  }
  func.func @transform_7(%arg0: i32) -> (i32, i32) {
    %c0_i32 = arith.constant 0 : i32
    %c0_i32_0 = arith.constant 0 : i32
    %c0_i32_1 = arith.constant 0 : i32
    return %c0_i32, %c0_i32_0 : i32, i32
  }
  func.func @transform_8(%arg0: i32) -> i32 {
    %c0_i32 = arith.constant 0 : i32
    %c0_i32_0 = arith.constant 0 : i32
    return %c0_i32 : i32
  }
  func.func @transform_9(%arg0: i32) -> (i32, i32) {
    %c0_i32 = arith.constant 0 : i32
    %c0_i32_0 = arith.constant 0 : i32
    %c0_i32_1 = arith.constant 0 : i32
    return %c0_i32, %c0_i32_0 : i32, i32
  }
  func.func @transform_10(%arg0: i32) -> (i32, i32) {
    %c0_i32 = arith.constant 0 : i32
    %c0_i32_0 = arith.constant 0 : i32
    %c0_i32_1 = arith.constant 0 : i32
    return %c0_i32, %c0_i32_0 : i32, i32
  }
  func.func @transform_11(%arg0: i32) -> (i32, i32, i32) {
    %c0_i32 = arith.constant 0 : i32
    %c0_i32_0 = arith.constant 0 : i32
    %c0_i32_1 = arith.constant 0 : i32
    return %arg0, %c0_i32, %c0_i32_0 : i32, i32, i32
  }
}

</mosaic_0001>

<llo_original>
// kernel: tpu_custom_call.1
$region0: #{tpu_custom_call.1}
  #allocation0 [shape = 'u32[]', space=smem, size = 0x4, offset = 0x4, fixed_abs, tag = 'smem constant byte address 0x4 - core index']
  #allocation1 [shape = 'u32[72,128]{1,0:T(1,128)}', space=vmem, size = 0x9000, scoped, tag = 'internal scratch']
  #allocation2 [shape = 'f32[16,512]{1,0:T(8,128)}', space=vmem, size = 0x8000, scoped, tag = 'scratch operand']
  #allocation3 [shape = 'f32[1]{0:T(128)S(6)}', space=smem, size = 0x200, scoped, tag = 'scoped memory for tpu_custom_call.1']
  %s0 = inlined_call_operand.vmem [shape: s32[2,256], index: 0, kind: input, shape index: {}]
  %s1 = inlined_call_operand.hbm [shape: f32[8,512], index: 1, kind: input, shape index: {}]
  %s2 = inlined_call_operand.vmem [shape: bf16[8,72], index: 2, kind: input, shape index: {}]
  %s3 = inlined_call_operand.vmem [shape: f32[8,1], index: 3, kind: input, shape index: {}]
  %s4 = inlined_call_operand.vmem [shape: bf16[8,72], index: 4, kind: input, shape index: {}]
  %s5 = inlined_call_operand.vmem [shape: f32[8,1], index: 5, kind: input, shape index: {}]
  %s6 = inlined_call_operand.vmem [shape: bf16[8,72], index: 6, kind: input, shape index: {}]
  %s7 = inlined_call_operand.vmem [shape: f32[8,1], index: 7, kind: input, shape index: {}]
  %s8 = inlined_call_operand.<no memory space> [shape: f32[1], index: 8, kind: input, shape index: {}]
  %s9 = inlined_call_operand.vmem [shape: bf16[10,128], index: 9, kind: input, shape index: {}]
  %s10 = inlined_call_operand.vmem [shape: f32[10,1], index: 10, kind: input, shape index: {}]
  %s11 = inlined_call_operand.vmem [shape: f32[2,10,1], index: 11, kind: output, shape index: {}]
  %s12 = sld [smem:[#allocation0]]
  $region81: #{tpu_custom_call.1} parent=0
    _
  %s14 = ssub.s32 1, %s12
  %s15 = scalar_select 0, %s14, %s12
  %16 = sst [smem:[#allocation3]] %s8
  $region1: #{tpu_custom_call.1} parent=0
    #allocation4 [shape = 'u8[16384]{0}', space=vmem, size = 0x4000, scoped, tag = 'input window, operand 1']
    #allocation5 [shape = 's32[2]{0}', space=sflag, size = 0x8, scoped, tag = 'scoped memory for tpu_custom_call.1']
    %17 = vsyncpa [#allocation5], 0
    %s18 = scalar_lea.sflag [#allocation5], 1
    %19 = vsyncpa %s18, 0
    loop: start=0, step=1, limit=4
    $region2: #{tpu_custom_call.1} parent=1 // loop_pre_header
      _
    $region3: #{tpu_custom_call.1} parent=1 // loop_header
      %s21 = sphi 0, %s25
      %p22 = scmp.ge.s32.totalorder %s21, 4
      %s29 = sphi 0, %s29
      %s31 = sphi 0, %s29
      %s32 = sphi 0, %s31
      %s46 = sphi 0, %s32
      %s52 = sphi 0, %s54
      %s55 = sphi 0, %s52
      %s56 = sphi 0, %s55
      %s72 = sphi 0, %s56
      %s76 = sphi 0, %s76
      %s78 = sphi 0, %s76
      %s79 = sphi 0, %s78
      %s93 = sphi 0, %s79
      %s97 = sphi 0, %s97
      %s99 = sphi 0, %s97
      %s100 = sphi 0, %s99
      %s114 = sphi 0, %s100
      %s118 = sphi 0, %s118
      %s120 = sphi 0, %s118
      %s121 = sphi 0, %s120
      %s135 = sphi 0, %s121
      %s139 = sphi 0, %s139
      %s141 = sphi 0, %s139
      %s142 = sphi 0, %s141
      %s156 = sphi 0, %s142
      %s160 = sphi 0, %s160
      %s162 = sphi 0, %s160
      %s163 = sphi 0, %s162
      %s177 = sphi 0, %s163
      %s181 = sphi 0, %s181
      %s183 = sphi 0, %s181
      %s184 = sphi 0, %s183
      %s198 = sphi 0, %s184
      %s202 = sphi 0, %s202
      %s204 = sphi 0, %s202
      %s205 = sphi 0, %s204
      %s219 = sphi 0, %s205
      %s223 = sphi 0, %s223
      %s225 = sphi 0, %s223
      %s226 = sphi 0, %s225
      %s240 = sphi 0, %s226
      %s244 = sphi 0, %s244
      %s246 = sphi 0, %s244
      %s247 = sphi 0, %s246
      %s261 = sphi 0, %s247
      %s267 = sphi 0, %s269
      %s270 = sphi 0, %s267
      %s271 = sphi 0, %s270
      %s287 = sphi 0, %s271
    $region4: #{tpu_custom_call.1} parent=1 // loop_header_branch
      %24 = sbr.rel (%p22) target = $region8
    $region5: #{tpu_custom_call.1} parent=1 // loop_body
      %s26 = ssub.s32 %s21, 1
      %s27 = ssub.s32 %s21, 2
      %s28 = sadd.s32 %s21, 1
      %s30 = sadd.s32 %s29, 1
      %p33 = scmp.eq.s32.totalorder %s21, 1
      %p34 = scmp.ne.s32.totalorder %s29, %s31
      %p35 = scmp.eq.s32.totalorder %s21, 0
      %p36 = por %p34, %p35
      %p37 = scmp.ne.s32.totalorder %s29, %s31
      %p38 = scmp.eq.s32.totalorder %s26, 1
      %p39 = por %p37, %p38
      %p40 = scmp.ne.s32.totalorder %s31, %s32
      %p41 = scmp.eq.s32.totalorder %s26, 0
      %p42 = por %p40, %p41
      %p43 = scmp.ne.s32.totalorder %s31, %s32
      %p44 = scmp.eq.s32.totalorder %s27, 1
      %p45 = por %p43, %p44
      %p47 = scmp.ne.s32.totalorder %s32, %s46
      %p48 = scmp.eq.s32.totalorder %s27, 0
      %p49 = por %p47, %p48
      %s50 = ssub.s32 %s21, %s28
      %p51 = scmp.eq.s32.totalorder %s50, 0
      %s53 = sadd.s32 %s52, 1
      %s54 = scalar_select %p51, %s52, %s53
      %p57 = pneg %p51
      %p58 = scmp.eq.s32.totalorder %s21, 1
      %p59 = por %p57, %p58
      %p60 = scmp.ne.s32.totalorder %s52, %s55
      %p61 = scmp.eq.s32.totalorder %s21, 0
      %p62 = por %p60, %p61
      %p63 = scmp.ne.s32.totalorder %s52, %s55
      %p64 = scmp.eq.s32.totalorder %s26, 1
      %p65 = por %p63, %p64
      %p66 = scmp.ne.s32.totalorder %s55, %s56
      %p67 = scmp.eq.s32.totalorder %s26, 0
      %p68 = por %p66, %p67
      %p69 = scmp.ne.s32.totalorder %s55, %s56
      %p70 = scmp.eq.s32.totalorder %s27, 1
      %p71 = por %p69, %p70
      %p73 = scmp.ne.s32.totalorder %s56, %s72
      %p74 = scmp.eq.s32.totalorder %s27, 0
      %p75 = por %p73, %p74
      %s77 = sadd.s32 %s76, 1
      %p80 = scmp.eq.s32.totalorder %s21, 1
      %p81 = scmp.ne.s32.totalorder %s76, %s78
      %p82 = scmp.eq.s32.totalorder %s21, 0
      %p83 = por %p81, %p82
      %p84 = scmp.ne.s32.totalorder %s76, %s78
      %p85 = scmp.eq.s32.totalorder %s26, 1
      %p86 = por %p84, %p85
      %p87 = scmp.ne.s32.totalorder %s78, %s79
      %p88 = scmp.eq.s32.totalorder %s26, 0
      %p89 = por %p87, %p88
      %p90 = scmp.ne.s32.totalorder %s78, %s79
      %p91 = scmp.eq.s32.totalorder %s27, 1
      %p92 = por %p90, %p91
      %p94 = scmp.ne.s32.totalorder %s79, %s93
      %p95 = scmp.eq.s32.totalorder %s27, 0
      %p96 = por %p94, %p95
      %s98 = sadd.s32 %s97, 1
      %p101 = scmp.eq.s32.totalorder %s21, 1
      %p102 = scmp.ne.s32.totalorder %s97, %s99
      %p103 = scmp.eq.s32.totalorder %s21, 0
      %p104 = por %p102, %p103
      %p105 = scmp.ne.s32.totalorder %s97, %s99
      %p106 = scmp.eq.s32.totalorder %s26, 1
      %p107 = por %p105, %p106
      %p108 = scmp.ne.s32.totalorder %s99, %s100
      %p109 = scmp.eq.s32.totalorder %s26, 0
      %p110 = por %p108, %p109
      %p111 = scmp.ne.s32.totalorder %s99, %s100
      %p112 = scmp.eq.s32.totalorder %s27, 1
      %p113 = por %p111, %p112
      %p115 = scmp.ne.s32.totalorder %s100, %s114
      %p116 = scmp.eq.s32.totalorder %s27, 0
      %p117 = por %p115, %p116
      %s119 = sadd.s32 %s118, 1
      %p122 = scmp.eq.s32.totalorder %s21, 1
      %p123 = scmp.ne.s32.totalorder %s118, %s120
      %p124 = scmp.eq.s32.totalorder %s21, 0
      %p125 = por %p123, %p124
      %p126 = scmp.ne.s32.totalorder %s118, %s120
      %p127 = scmp.eq.s32.totalorder %s26, 1
      %p128 = por %p126, %p127
      %p129 = scmp.ne.s32.totalorder %s120, %s121
      %p130 = scmp.eq.s32.totalorder %s26, 0
      %p131 = por %p129, %p130
      %p132 = scmp.ne.s32.totalorder %s120, %s121
      %p133 = scmp.eq.s32.totalorder %s27, 1
      %p134 = por %p132, %p133
      %p136 = scmp.ne.s32.totalorder %s121, %s135
      %p137 = scmp.eq.s32.totalorder %s27, 0
      %p138 = por %p136, %p137
      %s140 = sadd.s32 %s139, 1
      %p143 = scmp.eq.s32.totalorder %s21, 1
      %p144 = scmp.ne.s32.totalorder %s139, %s141
      %p145 = scmp.eq.s32.totalorder %s21, 0
      %p146 = por %p144, %p145
      %p147 = scmp.ne.s32.totalorder %s139, %s141
      %p148 = scmp.eq.s32.totalorder %s26, 1
      %p149 = por %p147, %p148
      %p150 = scmp.ne.s32.totalorder %s141, %s142
      %p151 = scmp.eq.s32.totalorder %s26, 0
      %p152 = por %p150, %p151
      %p153 = scmp.ne.s32.totalorder %s141, %s142
      %p154 = scmp.eq.s32.totalorder %s27, 1
      %p155 = por %p153, %p154
      %p157 = scmp.ne.s32.totalorder %s142, %s156
      %p158 = scmp.eq.s32.totalorder %s27, 0
      %p159 = por %p157, %p158
      %s161 = sadd.s32 %s160, 1
      %p164 = scmp.eq.s32.totalorder %s21, 1
      %p165 = scmp.ne.s32.totalorder %s160, %s162
      %p166 = scmp.eq.s32.totalorder %s21, 0
      %p167 = por %p165, %p166
      %p168 = scmp.ne.s32.totalorder %s160, %s162
      %p169 = scmp.eq.s32.totalorder %s26, 1
      %p170 = por %p168, %p169
      %p171 = scmp.ne.s32.totalorder %s162, %s163
      %p172 = scmp.eq.s32.totalorder %s26, 0
      %p173 = por %p171, %p172
      %p174 = scmp.ne.s32.totalorder %s162, %s163
      %p175 = scmp.eq.s32.totalorder %s27, 1
      %p176 = por %p174, %p175
      %p178 = scmp.ne.s32.totalorder %s163, %s177
      %p179 = scmp.eq.s32.totalorder %s27, 0
      %p180 = por %p178, %p179
      %s182 = sadd.s32 %s181, 1
      %p185 = scmp.eq.s32.totalorder %s21, 1
      %p186 = scmp.ne.s32.totalorder %s181, %s183
      %p187 = scmp.eq.s32.totalorder %s21, 0
      %p188 = por %p186, %p187
      %p189 = scmp.ne.s32.totalorder %s181, %s183
      %p190 = scmp.eq.s32.totalorder %s26, 1
      %p191 = por %p189, %p190
      %p192 = scmp.ne.s32.totalorder %s183, %s184
      %p193 = scmp.eq.s32.totalorder %s26, 0
      %p194 = por %p192, %p193
      %p195 = scmp.ne.s32.totalorder %s183, %s184
      %p196 = scmp.eq.s32.totalorder %s27, 1
      %p197 = por %p195, %p196
      %p199 = scmp.ne.s32.totalorder %s184, %s198
      %p200 = scmp.eq.s32.totalorder %s27, 0
      %p201 = por %p199, %p200
      %s203 = sadd.s32 %s202, 1
      %p206 = scmp.eq.s32.totalorder %s21, 1
      %p207 = scmp.ne.s32.totalorder %s202, %s204
      %p208 = scmp.eq.s32.totalorder %s21, 0
      %p209 = por %p207, %p208
      %p210 = scmp.ne.s32.totalorder %s202, %s204
      %p211 = scmp.eq.s32.totalorder %s26, 1
      %p212 = por %p210, %p211
      %p213 = scmp.ne.s32.totalorder %s204, %s205
      %p214 = scmp.eq.s32.totalorder %s26, 0
      %p215 = por %p213, %p214
      %p216 = scmp.ne.s32.totalorder %s204, %s205
      %p217 = scmp.eq.s32.totalorder %s27, 1
      %p218 = por %p216, %p217
      %p220 = scmp.ne.s32.totalorder %s205, %s219
      %p221 = scmp.eq.s32.totalorder %s27, 0
      %p222 = por %p220, %p221
      %s224 = sadd.s32 %s223, 1
      %p227 = scmp.eq.s32.totalorder %s21, 1
      %p228 = scmp.ne.s32.totalorder %s223, %s225
      %p229 = scmp.eq.s32.totalorder %s21, 0
      %p230 = por %p228, %p229
      %p231 = scmp.ne.s32.totalorder %s223, %s225
      %p232 = scmp.eq.s32.totalorder %s26, 1
      %p233 = por %p231, %p232
      %p234 = scmp.ne.s32.totalorder %s225, %s226
      %p235 = scmp.eq.s32.totalorder %s26, 0
      %p236 = por %p234, %p235
      %p237 = scmp.ne.s32.totalorder %s225, %s226
      %p238 = scmp.eq.s32.totalorder %s27, 1
      %p239 = por %p237, %p238
      %p241 = scmp.ne.s32.totalorder %s226, %s240
      %p242 = scmp.eq.s32.totalorder %s27, 0
      %p243 = por %p241, %p242
      %s245 = sadd.s32 %s244, 1
      %p248 = scmp.eq.s32.totalorder %s21, 1
      %p249 = scmp.ne.s32.totalorder %s244, %s246
      %p250 = scmp.eq.s32.totalorder %s21, 0
      %p251 = por %p249, %p250
      %p252 = scmp.ne.s32.totalorder %s244, %s246
      %p253 = scmp.eq.s32.totalorder %s26, 1
      %p254 = por %p252, %p253
      %p255 = scmp.ne.s32.totalorder %s246, %s247
      %p256 = scmp.eq.s32.totalorder %s26, 0
      %p257 = por %p255, %p256
      %p258 = scmp.ne.s32.totalorder %s246, %s247
      %p259 = scmp.eq.s32.totalorder %s27, 1
      %p260 = por %p258, %p259
      %p262 = scmp.ne.s32.totalorder %s247, %s261
      %p263 = scmp.eq.s32.totalorder %s27, 0
      %p264 = por %p262, %p263
      %s265 = ssub.s32 %s21, %s28
      %p266 = scmp.eq.s32.totalorder %s265, 0
      %s268 = sadd.s32 %s267, 1
      %s269 = scalar_select %p266, %s267, %s268
      %p272 = pneg %p266
      %p273 = scmp.eq.s32.totalorder %s21, 1
      %p274 = por %p272, %p273
      %p275 = scmp.ne.s32.totalorder %s267, %s270
      %p276 = scmp.eq.s32.totalorder %s21, 0
      %p277 = por %p275, %p276
      %p278 = scmp.ne.s32.totalorder %s267, %s270
      %p279 = scmp.eq.s32.totalorder %s26, 1
      %p280 = por %p278, %p279
      %p281 = scmp.ne.s32.totalorder %s270, %s271
      %p282 = scmp.eq.s32.totalorder %s26, 0
      %p283 = por %p281, %p282
      %p284 = scmp.ne.s32.totalorder %s270, %s271
      %p285 = scmp.eq.s32.totalorder %s27, 1
      %p286 = por %p284, %p285
      %p288 = scmp.ne.s32.totalorder %s271, %s287
      %p289 = scmp.eq.s32.totalorder %s27, 0
      %p290 = por %p288, %p289
      %p291 = scmp.le.s32.totalorder 1, %s21
      %p292 = scmp.lt.s32.totalorder %s21, 3
      %p293 = pnand %p291, %p292
      %p294 = pneg %p293
      // Predicated region
      $region9: #{tpu_custom_call.1} parent=5 // pred_check
        _
      $region10: #{tpu_custom_call.1} parent=5 // pred_check_branch
        %296 = sbr.rel (%p293) target = $region12
      $region11: #{tpu_custom_call.1} parent=5 // pred_region
        %s297 = ssub.s32 %s21, 1
        // Predicated region
        $region13: #{tpu_custom_call.1} parent=11 // pred_check
          %p298 = pneg %p42
        $region14: #{tpu_custom_call.1} parent=11 // pred_check_branch
          %300 = sbr.rel (%p298) target = $region16
        $region15: #{tpu_custom_call.1} parent=11 // pred_region
          _
        $region16: #{tpu_custom_call.1} parent=11 // pred_fallthru
          _
        // Predicated region
        $region17: #{tpu_custom_call.1} parent=11 // pred_check
          %p301 = pneg %p89
        $region18: #{tpu_custom_call.1} parent=11 // pred_check_branch
          %303 = sbr.rel (%p301) target = $region20
        $region19: #{tpu_custom_call.1} parent=11 // pred_region
          _
        $region20: #{tpu_custom_call.1} parent=11 // pred_fallthru
          _
        // Predicated region
        $region21: #{tpu_custom_call.1} parent=11 // pred_check
          %p304 = pneg %p110
        $region22: #{tpu_custom_call.1} parent=11 // pred_check_branch
          %306 = sbr.rel (%p304) target = $region24
        $region23: #{tpu_custom_call.1} parent=11 // pred_region
          _
        $region24: #{tpu_custom_call.1} parent=11 // pred_fallthru
          _
        // Predicated region
        $region25: #{tpu_custom_call.1} parent=11 // pred_check
          %p307 = pneg %p131
        $region26: #{tpu_custom_call.1} parent=11 // pred_check_branch
          %309 = sbr.rel (%p307) target = $region28
        $region27: #{tpu_custom_call.1} parent=11 // pred_region
          _
        $region28: #{tpu_custom_call.1} parent=11 // pred_fallthru
          _
        // Predicated region
        $region29: #{tpu_custom_call.1} parent=11 // pred_check
          %p310 = pneg %p152
        $region30: #{tpu_custom_call.1} parent=11 // pred_check_branch
          %312 = sbr.rel (%p310) target = $region32
        $region31: #{tpu_custom_call.1} parent=11 // pred_region
          _
        $region32: #{tpu_custom_call.1} parent=11 // pred_fallthru
          _
        // Predicated region
        $region33: #{tpu_custom_call.1} parent=11 // pred_check
          %p313 = pneg %p173
        $region34: #{tpu_custom_call.1} parent=11 // pred_check_branch
          %315 = sbr.rel (%p313) target = $region36
        $region35: #{tpu_custom_call.1} parent=11 // pred_region
          _
        $region36: #{tpu_custom_call.1} parent=11 // pred_fallthru
          _
        // Predicated region
        $region37: #{tpu_custom_call.1} parent=11 // pred_check
          %p316 = pneg %p194
        $region38: #{tpu_custom_call.1} parent=11 // pred_check_branch
          %318 = sbr.rel (%p316) target = $region40
        $region39: #{tpu_custom_call.1} parent=11 // pred_region
          _
        $region40: #{tpu_custom_call.1} parent=11 // pred_fallthru
          _
        // Predicated region
        $region41: #{tpu_custom_call.1} parent=11 // pred_check
          %p319 = pneg %p215
        $region42: #{tpu_custom_call.1} parent=11 // pred_check_branch
          %321 = sbr.rel (%p319) target = $region44
        $region43: #{tpu_custom_call.1} parent=11 // pred_region
          _
        $region44: #{tpu_custom_call.1} parent=11 // pred_fallthru
          _
        // Predicated region
        $region45: #{tpu_custom_call.1} parent=11 // pred_check
          %p322 = pneg %p236
        $region46: #{tpu_custom_call.1} parent=11 // pred_check_branch
          %324 = sbr.rel (%p322) target = $region48
        $region47: #{tpu_custom_call.1} parent=11 // pred_region
          _
        $region48: #{tpu_custom_call.1} parent=11 // pred_fallthru
          _
        // Predicated region
        $region49: #{tpu_custom_call.1} parent=11 // pred_check
          %p325 = pneg %p257
        $region50: #{tpu_custom_call.1} parent=11 // pred_check_branch
          %327 = sbr.rel (%p325) target = $region52
        $region51: #{tpu_custom_call.1} parent=11 // pred_region
          _
        $region52: #{tpu_custom_call.1} parent=11 // pred_fallthru
          _
      $region12: #{tpu_custom_call.1} parent=5 // pred_fallthru
        _
      %p328 = scmp.lt.s32.totalorder %s21, 2
      // Predicated region
      $region53: #{tpu_custom_call.1} parent=5 // pred_check
        %p329 = pneg %p328
      $region54: #{tpu_custom_call.1} parent=5 // pred_check_branch
        %331 = sbr.rel (%p329) target = $region56
      $region55: #{tpu_custom_call.1} parent=5 // pred_region
        // Predicated region
        $region57: #{tpu_custom_call.1} parent=55 // pred_check
          %p332 = pneg %p62
        $region58: #{tpu_custom_call.1} parent=55 // pred_check_branch
          %334 = sbr.rel (%p332) target = $region60
        $region59: #{tpu_custom_call.1} parent=55 // pred_region
          %s335 = sand.u32 %s52, 1
          %s336 = scalar_lea.sflag [#allocation5], %s335
          %s337 = sand.u32 %s52, 1
          %s338 = smul.addr %s337, 16
          %s339 = scalar_lea.vmem [#allocation4], %s338
          %s340 = smul.u32 2, %s21
          %342 = vsyncadd %s336, 0
          %s343 = smul.addr %s340, 8
          %s344 = scalar_lea.hbm %s1, %s343
          %s346 = sshll.u32 %s344, 4
          %s347 = int_to_ptr.hbm [resolvable:$true] %s346
          %s348 = sshll.u32 %s339, 4
          %s349 = int_to_ptr.vmem [resolvable:$true] %s348
          %351 = dma.hbm_to_vmem [thread:$0]  %s347, 256, %s349, %s336
        $region60: #{tpu_custom_call.1} parent=55 // pred_fallthru
          _
      $region56: #{tpu_custom_call.1} parent=5 // pred_fallthru
        _
      %p352 = scmp.le.s32.totalorder 1, %s21
      %p353 = scmp.lt.s32.totalorder %s21, 3
      %p354 = pnand %p352, %p353
      %p355 = pneg %p354
      // Predicated region
      $region61: #{tpu_custom_call.1} parent=5 // pred_check
        _
      $region62: #{tpu_custom_call.1} parent=5 // pred_check_branch
        %357 = sbr.rel (%p354) target = $region64
      $region63: #{tpu_custom_call.1} parent=5 // pred_region
        %s358 = ssub.s32 %s21, 1
        %s359 = sand.u32 %s55, 1
        %s360 = scalar_lea.sflag [#allocation5], %s359
        %s361 = sand.u32 %s55, 1
        %s362 = smul.addr %s361, 16
        %s363 = scalar_lea.vmem [#allocation4], %s362
        // Predicated region
        $region65: #{tpu_custom_call.1} parent=63 // pred_check
          %p364 = pneg %p68
        $region66: #{tpu_custom_call.1} parent=63 // pred_check_branch
          %366 = sbr.rel (%p364) target = $region68
        $region67: #{tpu_custom_call.1} parent=63 // pred_region
          %368 = dma.done %s360, 256
        $region68: #{tpu_custom_call.1} parent=63 // pred_fallthru
          _
        %p369 = pneg %p42
        %p370 = pneg %p39
        %s371 = sand.u32 %s55, 1
        %s372 = scalar_lea.sflag [#allocation5], %s371
        %s373 = sand.u32 %s55, 1
        %s374 = smul.addr %s373, 16
        %s375 = scalar_lea.vmem [#allocation4], %s374
        %p376 = pneg %p68
        %p377 = pneg %p65
        %p378 = pneg %p89
        %p379 = pneg %p86
        %p380 = pneg %p110
        %p381 = pneg %p107
        %p382 = pneg %p131
        %p383 = pneg %p128
        %p384 = pneg %p152
        %p385 = pneg %p149
        %p386 = pneg %p173
        %p387 = pneg %p170
        %p388 = pneg %p194
        %p389 = pneg %p191
        %p390 = pneg %p215
        %p391 = pneg %p212
        %p392 = pneg %p236
        %p393 = pneg %p233
        %p394 = pneg %p257
        %p395 = pneg %p254
        %p396 = pneg %p283
        %p397 = pneg %p280
        %p398 = scmp.lt.s32.totalorder %s26, 1
        %s399 = scalar_select %p398, %s26, 1
        %s400 = smul.addr %s399, 2
        %s401 = smul.addr %s400, 8
        %s402 = scalar_lea.vmem %s11, %s401
        %s403 = smul.u32 2, %s26
        %p404 = scmp.lt.s32.totalorder %s26, 1
        %s405 = scalar_select %p404, %s26, 1
        %s406 = smul.addr %s405, 2
        %s407 = smul.addr %s406, 8
        %s408 = scalar_lea.vmem %s11, %s407
        %v410 = vld [vmem:[%s0] ss:$2 sm:$0x3]
        %s411 = scalar_lea.vmem %s0, 1
        %v412 = vld [vmem:[%s411] ss:$2 sm:$0x3]
        %vm413 = vcmp.ge.s32.totalorder %v410, 1
        %vm414 = vcmp.le.s32.totalorder %v410, 16
        %vm415 = vmand %vm413, %vm414
        %vm416 = vcmp.ge.s32.totalorder %v410, 0
        %vm417 = vcmp.le.s32.totalorder %v410, 15
        %vm418 = vmand %vm416, %vm417
        %vm419 = vcmp.ge.s32.totalorder %v410, 4294967295
        %vm420 = vcmp.le.s32.totalorder %v410, 14
        %vm421 = vmand %vm419, %vm420
        %vm422 = vcmp.ge.s32.totalorder %v412, 1
        %vm423 = vcmp.le.s32.totalorder %v412, 16
        %vm424 = vmand %vm422, %vm423
        %vm425 = vcmp.ge.s32.totalorder %v412, 0
        %vm426 = vcmp.le.s32.totalorder %v412, 15
        %vm427 = vmand %vm425, %vm426
        %vm428 = vcmp.ge.s32.totalorder %v412, 4294967295
        %vm429 = vcmp.le.s32.totalorder %v412, 14
        %vm430 = vmand %vm428, %vm429
        %vm431 = vmand %vm415, %vm424
        %v432 = vsel %vm431, 1, 0
        %v433 = vperm.slane %v432, 0
        %v434 = vperm.slane %v432, 1
        %vm435 = vcmp.eq.s32.totalorder %v433, 1
        %vm436 = vcmp.eq.s32.totalorder %v434, 1
        %vm437 = vmand %vm415, %vm427
        %v438 = vsel %vm437, 1, 0
        %v439 = vperm.slane %v438, 0
        %v440 = vperm.slane %v438, 1
        %vm441 = vcmp.eq.s32.totalorder %v439, 1
        %vm442 = vcmp.eq.s32.totalorder %v440, 1
        %vm443 = vmand %vm415, %vm430
        %v444 = vsel %vm443, 1, 0
        %v445 = vperm.slane %v444, 0
        %v446 = vperm.slane %v444, 1
        %vm447 = vcmp.eq.s32.totalorder %v445, 1
        %vm448 = vcmp.eq.s32.totalorder %v446, 1
        %vm449 = vmand %vm418, %vm424
        %v450 = vsel %vm449, 1, 0
        %v451 = vperm.slane %v450, 0
        %v452 = vperm.slane %v450, 1
        %vm453 = vcmp.eq.s32.totalorder %v451, 1
        %vm454 = vcmp.eq.s32.totalorder %v452, 1
        %vm455 = vmand %vm418, %vm427
        %v456 = vsel %vm455, 1, 0
        %v457 = vperm.slane %v456, 0
        %v458 = vperm.slane %v456, 1
        %vm459 = vcmp.eq.s32.totalorder %v457, 1
        %vm460 = vcmp.eq.s32.totalorder %v458, 1
        %vm461 = vmand %vm418, %vm430
        %v462 = vsel %vm461, 1, 0
        %v463 = vperm.slane %v462, 0
        %v464 = vperm.slane %v462, 1
        %vm465 = vcmp.eq.s32.totalorder %v463, 1
        %vm466 = vcmp.eq.s32.totalorder %v464, 1
        %vm467 = vmand %vm421, %vm424
        %v468 = vsel %vm467, 1, 0
        %v469 = vperm.slane %v468, 0
        %v470 = vperm.slane %v468, 1
        %vm471 = vcmp.eq.s32.totalorder %v469, 1
        %vm472 = vcmp.eq.s32.totalorder %v470, 1
        %vm473 = vmand %vm421, %vm427
        %v474 = vsel %vm473, 1, 0
        %v475 = vperm.slane %v474, 0
        %v476 = vperm.slane %v474, 1
        %vm477 = vcmp.eq.s32.totalorder %v475, 1
        %vm478 = vcmp.eq.s32.totalorder %v476, 1
        %vm479 = vmand %vm421, %vm430
        %v480 = vsel %vm479, 1, 0
        %v481 = vperm.slane %v480, 0
        %v482 = vperm.slane %v480, 1
        %vm483 = vcmp.eq.s32.totalorder %v481, 1
        %vm484 = vcmp.eq.s32.totalorder %v482, 1
        %v485 = vld [vmem:[%s363] sm:$0xff]
        %v486 = vld [vmem:[%s363 + $0x8] sm:$0xff]
        %v487 = vmax.f32 %v485, 0.0
        %v488 = vmax.f32 %v486, 0.0
        %489 = vst [vmem:[#allocation2 + $0x8] sm:$0xff] %v487
        %490 = vst [vmem:[#allocation2 + $0x10] sm:$0xff] %v488
        %v491 = vld [vmem:[#allocation2] sm:$0xff]
        %v492 = vld [vmem:[#allocation2 + $0x8] sm:$0xff]
        %v493 = vld [vmem:[#allocation2 + $0x10] sm:$0xff]
        %497 = vrot.lane.b32.xlu0 %v491, 17
        %v498 = vpop.permute.xlu0 %497
        %499 = vrot.lane.b32.xlu0 %v492, 17
        %v500 = vpop.permute.xlu0 %499
        %501 = vrot.lane.b32.xlu0 %v493, 17
        %v502 = vpop.permute.xlu0 %501
        %vm503 = vcmask 138240
        %v504 = vsel %vm503, %v498, %v500
        %v505 = vsel %vm503, %v500, %v502
        %v508 = vsel %vm435, %v504, 0.0
        %v509 = vsel %vm436, %v505, 0.0
        %510 = vrot.lane.b32.xlu0 %v491, 16
        %v511 = vpop.permute.xlu0 %510
        %512 = vrot.lane.b32.xlu0 %v492, 16
        %v513 = vpop.permute.xlu0 %512
        %514 = vrot.lane.b32.xlu0 %v493, 16
        %v515 = vpop.permute.xlu0 %514
        %vm516 = vcmask 130048
        %v517 = vsel %vm516, %v511, %v513
        %v518 = vsel %vm516, %v513, %v515
        %v521 = vsel %vm441, %v517, 0.0
        %v522 = vsel %vm442, %v518, 0.0
        %523 = vrot.lane.b32.xlu0 %v491, 15
        %v524 = vpop.permute.xlu0 %523
        %525 = vrot.lane.b32.xlu0 %v492, 15
        %v526 = vpop.permute.xlu0 %525
        %527 = vrot.lane.b32.xlu0 %v493, 15
        %v528 = vpop.permute.xlu0 %527
        %vm529 = vcmask 121856
        %v530 = vsel %vm529, %v524, %v526
        %v531 = vsel %vm529, %v526, %v528
        %v534 = vsel %vm447, %v530, 0.0
        %v535 = vsel %vm448, %v531, 0.0
        %536 = vrot.lane.b32.xlu0 %v491, 1
        %v537 = vpop.permute.xlu0 %536
        %538 = vrot.lane.b32.xlu0 %v492, 1
        %v539 = vpop.permute.xlu0 %538
        %540 = vrot.lane.b32.xlu0 %v493, 1
        %v541 = vpop.permute.xlu0 %540
        %vm542 = vcmask 7168
        %v543 = vsel %vm542, %v537, %v539
        %v544 = vsel %vm542, %v539, %v541
        %v547 = vsel %vm453, %v543, 0.0
        %v548 = vsel %vm454, %v544, 0.0
        %v549 = vsel %vm459, %v492, 0.0
        %v550 = vsel %vm460, %v493, 0.0
        %v551 = vld [vmem:[#allocation2 + $0x18] sm:$0xff]
        %553 = vrot.lane.b32.xlu0 %v492, 127
        %v554 = vpop.permute.xlu0 %553
        %555 = vrot.lane.b32.xlu0 %v493, 127
        %v556 = vpop.permute.xlu0 %555
        %557 = vrot.lane.b32.xlu0 %v551, 127
        %v558 = vpop.permute.xlu0 %557
        %vm559 = vcmask 1039360
        %v560 = vsel %vm559, %v554, %v556
        %v561 = vsel %vm559, %v556, %v558
        %v564 = vsel %vm465, %v560, 0.0
        %v565 = vsel %vm466, %v561, 0.0
        %566 = vrot.lane.b32.xlu0 %v492, 113
        %v567 = vpop.permute.xlu0 %566
        %568 = vrot.lane.b32.xlu0 %v493, 113
        %v569 = vpop.permute.xlu0 %568
        %570 = vrot.lane.b32.xlu0 %v551, 113
        %v571 = vpop.permute.xlu0 %570
        %vm572 = vcmask 924672
        %v573 = vsel %vm572, %v567, %v569
        %v574 = vsel %vm572, %v569, %v571
        %v577 = vsel %vm471, %v573, 0.0
        %v578 = vsel %vm472, %v574, 0.0
        %579 = vrot.lane.b32.xlu0 %v492, 112
        %v580 = vpop.permute.xlu0 %579
        %581 = vrot.lane.b32.xlu0 %v493, 112
        %v582 = vpop.permute.xlu0 %581
        %583 = vrot.lane.b32.xlu0 %v551, 112
        %v584 = vpop.permute.xlu0 %583
        %vm585 = vcmask 916480
        %v586 = vsel %vm585, %v580, %v582
        %v587 = vsel %vm585, %v582, %v584
        %v590 = vsel %vm477, %v586, 0.0
        %v591 = vsel %vm478, %v587, 0.0
        %592 = vrot.lane.b32.xlu0 %v492, 111
        %v593 = vpop.permute.xlu0 %592
        %594 = vrot.lane.b32.xlu0 %v493, 111
        %v595 = vpop.permute.xlu0 %594
        %596 = vrot.lane.b32.xlu0 %v551, 111
        %v597 = vpop.permute.xlu0 %596
        %vm598 = vcmask 908288
        %v599 = vsel %vm598, %v593, %v595
        %v600 = vsel %vm598, %v595, %v597
        %v603 = vsel %vm483, %v599, 0.0
        %v604 = vsel %vm484, %v600, 0.0
        %v605 = vpack.c.bf16 %v521, %v508
        %v606 = vpack.c.bf16 %v522, %v509
        %v607 = vpack.c.bf16 %v547, %v534
        %v608 = vpack.c.bf16 %v548, %v535
        %v609 = vpack.c.bf16 %v564, %v549
        %v610 = vpack.c.bf16 %v565, %v550
        %v611 = vpack.c.bf16 %v590, %v577
        %v612 = vpack.c.bf16 %v591, %v578
        %v613 = vpack.c.bf16 %v603, %v603
        %v614 = vpack.c.bf16 %v604, %v604
        %v615 = vld [vmem:[%s2] sm:$0xf]
        %v616 = vld [vmem:[%s3] sm:$0xff]
        %618 = vset.pattern.permute.xlu0 0
        %619 = vperm.xlu0 %618, %v616
        %v620 = vpop.permute.xlu0 %619
        %vm622 = vcmask 588800
        %v624 = vsel %vm622, %v615, 0
        %vm626 = vcmask 1043456
        %v628 = vsel %vm626, %v613, 0
        %v631 = vsel %vm626, %v614, 0
        %633 = vmatpush.bf16.msra.mxu0 0
        %634 = vmatpush.bf16.msra.mxu0 0
        %635 = vmatpush.bf16.msra.mxu0 0
        %636 = vmatpush.bf16.msra.mxu0 %v628
        %637 = vmatpush.bf16.msra.mxu0 %v611
        %638 = vmatpush.bf16.msra.mxu0 %v609
        %639 = vmatpush.bf16.msra.mxu0 %v607
        %640 = vmatpush.bf16.msra.mxu0 %v605
        %641 = vmatmul.bf16.gmra.mxu0 %v624
        %v642 = vpop.f32.mrf.mxu0
        %v643 = vadd.f32 %v620, %v642
        %v644 = vpop.f32.mrf.mxu0
        %645 = vdwg.mxu0
        %646 = vmatpush.bf16.msra.mxu0 0
        %647 = vmatpush.bf16.msra.mxu0 0
        %648 = vmatpush.bf16.msra.mxu0 0
        %649 = vmatpush.bf16.msra.mxu0 %v631
        %650 = vmatpush.bf16.msra.mxu0 %v612
        %651 = vmatpush.bf16.msra.mxu0 %v610
        %652 = vmatpush.bf16.msra.mxu0 %v608
        %653 = vmatpush.bf16.msra.mxu0 %v606
        %654 = vmatmul.bf16.gmra.mxu0 %v624
        %v655 = vpop.f32.mrf.mxu0
        %v656 = vadd.f32 %v620, %v655
        %v657 = vpop.f32.mrf.mxu0
        %658 = vdwg.mxu0
        %659 = vst [vmem:[#allocation2 + $0x8] sm:$0xff] %v643
        %660 = vst [vmem:[#allocation2 + $0x10] sm:$0xff] %v656
        %v661 = vld [vmem:[#allocation2] sm:$0xff]
        %v662 = vld [vmem:[#allocation2 + $0x8] sm:$0xff]
        %v663 = vld [vmem:[#allocation2 + $0x10] sm:$0xff]
        %667 = vrot.lane.b32.xlu0 %v661, 17
        %v668 = vpop.permute.xlu0 %667
        %669 = vrot.lane.b32.xlu0 %v662, 17
        %v670 = vpop.permute.xlu0 %669
        %671 = vrot.lane.b32.xlu0 %v663, 17
        %v672 = vpop.permute.xlu0 %671
        %v673 = vsel %vm503, %v668, %v670
        %v674 = vsel %vm503, %v670, %v672
        %v677 = vsel %vm435, %v673, 0.0
        %v678 = vsel %vm436, %v674, 0.0
        %679 = vrot.lane.b32.xlu0 %v661, 16
        %v680 = vpop.permute.xlu0 %679
        %681 = vrot.lane.b32.xlu0 %v662, 16
        %v682 = vpop.permute.xlu0 %681
        %683 = vrot.lane.b32.xlu0 %v663, 16
        %v684 = vpop.permute.xlu0 %683
        %v685 = vsel %vm516, %v680, %v682
        %v686 = vsel %vm516, %v682, %v684
        %v689 = vsel %vm441, %v685, 0.0
        %v690 = vsel %vm442, %v686, 0.0
        %691 = vrot.lane.b32.xlu0 %v661, 15
        %v692 = vpop.permute.xlu0 %691
        %693 = vrot.lane.b32.xlu0 %v662, 15
        %v694 = vpop.permute.xlu0 %693
        %695 = vrot.lane.b32.xlu0 %v663, 15
        %v696 = vpop.permute.xlu0 %695
        %v697 = vsel %vm529, %v692, %v694
        %v698 = vsel %vm529, %v694, %v696
        %v701 = vsel %vm447, %v697, 0.0
        %v702 = vsel %vm448, %v698, 0.0
        %703 = vrot.lane.b32.xlu0 %v661, 1
        %v704 = vpop.permute.xlu0 %703
        %705 = vrot.lane.b32.xlu0 %v662, 1
        %v706 = vpop.permute.xlu0 %705
        %707 = vrot.lane.b32.xlu0 %v663, 1
        %v708 = vpop.permute.xlu0 %707
        %v709 = vsel %vm542, %v704, %v706
        %v710 = vsel %vm542, %v706, %v708
        %v713 = vsel %vm453, %v709, 0.0
        %v714 = vsel %vm454, %v710, 0.0
        %v715 = vsel %vm459, %v662, 0.0
        %v716 = vsel %vm460, %v663, 0.0
        %v717 = vld [vmem:[#allocation2 + $0x18] sm:$0xff]
        %719 = vrot.lane.b32.xlu0 %v662, 127
        %v720 = vpop.permute.xlu0 %719
        %721 = vrot.lane.b32.xlu0 %v663, 127
        %v722 = vpop.permute.xlu0 %721
        %723 = vrot.lane.b32.xlu0 %v717, 127
        %v724 = vpop.permute.xlu0 %723
        %v725 = vsel %vm559, %v720, %v722
        %v726 = vsel %vm559, %v722, %v724
        %v729 = vsel %vm465, %v725, 0.0
        %v730 = vsel %vm466, %v726, 0.0
        %731 = vrot.lane.b32.xlu0 %v662, 113
        %v732 = vpop.permute.xlu0 %731
        %733 = vrot.lane.b32.xlu0 %v663, 113
        %v734 = vpop.permute.xlu0 %733
        %735 = vrot.lane.b32.xlu0 %v717, 113
        %v736 = vpop.permute.xlu0 %735
        %v737 = vsel %vm572, %v732, %v734
        %v738 = vsel %vm572, %v734, %v736
        %v741 = vsel %vm471, %v737, 0.0
        %v742 = vsel %vm472, %v738, 0.0
        %743 = vrot.lane.b32.xlu0 %v662, 112
        %v744 = vpop.permute.xlu0 %743
        %745 = vrot.lane.b32.xlu0 %v663, 112
        %v746 = vpop.permute.xlu0 %745
        %747 = vrot.lane.b32.xlu0 %v717, 112
        %v748 = vpop.permute.xlu0 %747
        %v749 = vsel %vm585, %v744, %v746
        %v750 = vsel %vm585, %v746, %v748
        %v753 = vsel %vm477, %v749, 0.0
        %v754 = vsel %vm478, %v750, 0.0
        %755 = vrot.lane.b32.xlu0 %v662, 111
        %v756 = vpop.permute.xlu0 %755
        %757 = vrot.lane.b32.xlu0 %v663, 111
        %v758 = vpop.permute.xlu0 %757
        %759 = vrot.lane.b32.xlu0 %v717, 111
        %v760 = vpop.permute.xlu0 %759
        %v761 = vsel %vm598, %v756, %v758
        %v762 = vsel %vm598, %v758, %v760
        %v765 = vsel %vm483, %v761, 0.0
        %v766 = vsel %vm484, %v762, 0.0
        %v767 = vpack.c.bf16 %v689, %v677
        %v768 = vpack.c.bf16 %v690, %v678
        %v769 = vpack.c.bf16 %v713, %v701
        %v770 = vpack.c.bf16 %v714, %v702
        %v771 = vpack.c.bf16 %v729, %v715
        %v772 = vpack.c.bf16 %v730, %v716
        %v773 = vpack.c.bf16 %v753, %v741
        %v774 = vpack.c.bf16 %v754, %v742
        %v775 = vpack.c.bf16 %v765, %v765
        %v776 = vpack.c.bf16 %v766, %v766
        %v777 = vld [vmem:[%s4] sm:$0xf]
        %v778 = vld [vmem:[%s5] sm:$0xff]
        %780 = vset.pattern.permute.xlu0 0
        %781 = vperm.xlu0 %780, %v778
        %v782 = vpop.permute.xlu0 %781
        %v785 = vsel %vm622, %v777, 0
        %v788 = vsel %vm626, %v775, 0
        %v791 = vsel %vm626, %v776, 0
        %793 = vmatpush.bf16.msra.mxu0 0
        %794 = vmatpush.bf16.msra.mxu0 0
        %795 = vmatpush.bf16.msra.mxu0 0
        %796 = vmatpush.bf16.msra.mxu0 %v788
        %797 = vmatpush.bf16.msra.mxu0 %v773
        %798 = vmatpush.bf16.msra.mxu0 %v771
        %799 = vmatpush.bf16.msra.mxu0 %v769
        %800 = vmatpush.bf16.msra.mxu0 %v767
        %801 = vmatmul.bf16.gmra.mxu0 %v785
        %v802 = vpop.f32.mrf.mxu0
        %v803 = vadd.f32 %v782, %v802
        %v804 = vpop.f32.mrf.mxu0
        %805 = vdwg.mxu0
        %806 = vmatpush.bf16.msra.mxu0 0
        %807 = vmatpush.bf16.msra.mxu0 0
        %808 = vmatpush.bf16.msra.mxu0 0
        %809 = vmatpush.bf16.msra.mxu0 %v791
        %810 = vmatpush.bf16.msra.mxu0 %v774
        %811 = vmatpush.bf16.msra.mxu0 %v772
        %812 = vmatpush.bf16.msra.mxu0 %v770
        %813 = vmatpush.bf16.msra.mxu0 %v768
        %814 = vmatmul.bf16.gmra.mxu0 %v785
        %v815 = vpop.f32.mrf.mxu0
        %v816 = vadd.f32 %v782, %v815
        %v817 = vpop.f32.mrf.mxu0
        %818 = vdwg.mxu0
        %819 = vst [vmem:[#allocation2 + $0x8] sm:$0xff] %v803
        %820 = vst [vmem:[#allocation2 + $0x10] sm:$0xff] %v816
        %v821 = vld [vmem:[#allocation2] sm:$0xff]
        %v822 = vld [vmem:[#allocation2 + $0x8] sm:$0xff]
        %v823 = vld [vmem:[#allocation2 + $0x10] sm:$0xff]
        %827 = vrot.lane.b32.xlu0 %v821, 17
        %v828 = vpop.permute.xlu0 %827
        %829 = vrot.lane.b32.xlu0 %v822, 17
        %v830 = vpop.permute.xlu0 %829
        %831 = vrot.lane.b32.xlu0 %v823, 17
        %v832 = vpop.permute.xlu0 %831
        %v833 = vsel %vm503, %v828, %v830
        %v834 = vsel %vm503, %v830, %v832
        %v837 = vsel %vm435, %v833, 0.0
        %v838 = vsel %vm436, %v834, 0.0
        %839 = vrot.lane.b32.xlu0 %v821, 16
        %v840 = vpop.permute.xlu0 %839
        %841 = vrot.lane.b32.xlu0 %v822, 16
        %v842 = vpop.permute.xlu0 %841
        %843 = vrot.lane.b32.xlu0 %v823, 16
        %v844 = vpop.permute.xlu0 %843
        %v845 = vsel %vm516, %v840, %v842
        %v846 = vsel %vm516, %v842, %v844
        %v849 = vsel %vm441, %v845, 0.0
        %v850 = vsel %vm442, %v846, 0.0
        %851 = vrot.lane.b32.xlu0 %v821, 15
        %v852 = vpop.permute.xlu0 %851
        %853 = vrot.lane.b32.xlu0 %v822, 15
        %v854 = vpop.permute.xlu0 %853
        %855 = vrot.lane.b32.xlu0 %v823, 15
        %v856 = vpop.permute.xlu0 %855
        %v857 = vsel %vm529, %v852, %v854
        %v858 = vsel %vm529, %v854, %v856
        %v861 = vsel %vm447, %v857, 0.0
        %v862 = vsel %vm448, %v858, 0.0
        %863 = vrot.lane.b32.xlu0 %v821, 1
        %v864 = vpop.permute.xlu0 %863
        %865 = vrot.lane.b32.xlu0 %v822, 1
        %v866 = vpop.permute.xlu0 %865
        %867 = vrot.lane.b32.xlu0 %v823, 1
        %v868 = vpop.permute.xlu0 %867
        %v869 = vsel %vm542, %v864, %v866
        %v870 = vsel %vm542, %v866, %v868
        %v873 = vsel %vm453, %v869, 0.0
        %v874 = vsel %vm454, %v870, 0.0
        %v875 = vsel %vm459, %v822, 0.0
        %v876 = vsel %vm460, %v823, 0.0
        %v877 = vld [vmem:[#allocation2 + $0x18] sm:$0xff]
        %879 = vrot.lane.b32.xlu0 %v822, 127
        %v880 = vpop.permute.xlu0 %879
        %881 = vrot.lane.b32.xlu0 %v823, 127
        %v882 = vpop.permute.xlu0 %881
        %883 = vrot.lane.b32.xlu0 %v877, 127
        %v884 = vpop.permute.xlu0 %883
        %v885 = vsel %vm559, %v880, %v882
        %v886 = vsel %vm559, %v882, %v884
        %v889 = vsel %vm465, %v885, 0.0
        %v890 = vsel %vm466, %v886, 0.0
        %891 = vrot.lane.b32.xlu0 %v822, 113
        %v892 = vpop.permute.xlu0 %891
        %893 = vrot.lane.b32.xlu0 %v823, 113
        %v894 = vpop.permute.xlu0 %893
        %895 = vrot.lane.b32.xlu0 %v877, 113
        %v896 = vpop.permute.xlu0 %895
        %v897 = vsel %vm572, %v892, %v894
        %v898 = vsel %vm572, %v894, %v896
        %v901 = vsel %vm471, %v897, 0.0
        %v902 = vsel %vm472, %v898, 0.0
        %903 = vrot.lane.b32.xlu0 %v822, 112
        %v904 = vpop.permute.xlu0 %903
        %905 = vrot.lane.b32.xlu0 %v823, 112
        %v906 = vpop.permute.xlu0 %905
        %907 = vrot.lane.b32.xlu0 %v877, 112
        %v908 = vpop.permute.xlu0 %907
        %v909 = vsel %vm585, %v904, %v906
        %v910 = vsel %vm585, %v906, %v908
        %v913 = vsel %vm477, %v909, 0.0
        %v914 = vsel %vm478, %v910, 0.0
        %915 = vrot.lane.b32.xlu0 %v822, 111
        %v916 = vpop.permute.xlu0 %915
        %917 = vrot.lane.b32.xlu0 %v823, 111
        %v918 = vpop.permute.xlu0 %917
        %919 = vrot.lane.b32.xlu0 %v877, 111
        %v920 = vpop.permute.xlu0 %919
        %v921 = vsel %vm598, %v916, %v918
        %v922 = vsel %vm598, %v918, %v920
        %v925 = vsel %vm483, %v921, 0.0
        %v926 = vsel %vm484, %v922, 0.0
        %v927 = vpack.c.bf16 %v849, %v837
        %v928 = vpack.c.bf16 %v850, %v838
        %v929 = vpack.c.bf16 %v873, %v861
        %v930 = vpack.c.bf16 %v874, %v862
        %v931 = vpack.c.bf16 %v889, %v875
        %v932 = vpack.c.bf16 %v890, %v876
        %v933 = vpack.c.bf16 %v913, %v901
        %v934 = vpack.c.bf16 %v914, %v902
        %v935 = vpack.c.bf16 %v925, %v925
        %v936 = vpack.c.bf16 %v926, %v926
        %v937 = vld [vmem:[%s6] sm:$0xf]
        %v938 = vld [vmem:[%s7] sm:$0xff]
        %940 = vset.pattern.permute.xlu0 0
        %941 = vperm.xlu0 %940, %v938
        %v942 = vpop.permute.xlu0 %941
        %v945 = vsel %vm622, %v937, 0
        %v948 = vsel %vm626, %v935, 0
        %v951 = vsel %vm626, %v936, 0
        %953 = vmatpush.bf16.msra.mxu0 0
        %954 = vmatpush.bf16.msra.mxu0 0
        %955 = vmatpush.bf16.msra.mxu0 0
        %956 = vmatpush.bf16.msra.mxu0 %v948
        %957 = vmatpush.bf16.msra.mxu0 %v933
        %958 = vmatpush.bf16.msra.mxu0 %v931
        %959 = vmatpush.bf16.msra.mxu0 %v929
        %960 = vmatpush.bf16.msra.mxu0 %v927
        %961 = vmatmul.bf16.gmra.mxu0 %v945
        %v962 = vpop.f32.mrf.mxu0
        %v963 = vadd.f32 %v942, %v962
        %v964 = vpop.f32.mrf.mxu0
        %965 = vdwg.mxu0
        %966 = vmatpush.bf16.msra.mxu0 0
        %967 = vmatpush.bf16.msra.mxu0 0
        %968 = vmatpush.bf16.msra.mxu0 0
        %969 = vmatpush.bf16.msra.mxu0 %v951
        %970 = vmatpush.bf16.msra.mxu0 %v934
        %971 = vmatpush.bf16.msra.mxu0 %v932
        %972 = vmatpush.bf16.msra.mxu0 %v930
        %973 = vmatpush.bf16.msra.mxu0 %v928
        %974 = vmatmul.bf16.gmra.mxu0 %v945
        %v975 = vpop.f32.mrf.mxu0
        %v976 = vadd.f32 %v942, %v975
        %v977 = vpop.f32.mrf.mxu0
        %978 = vdwg.mxu0
        %979 = vst [vmem:[#allocation2 + $0x8] sm:$0xff] %v963
        %980 = vst [vmem:[#allocation2 + $0x10] sm:$0xff] %v976
        %v981 = vld [vmem:[#allocation2 + $0x8] sm:$0xff]
        %v982 = vld [vmem:[#allocation2 + $0x10] sm:$0xff]
        %v983 = vld [vmem:[#allocation2 + $0x18] sm:$0xff]
        %987 = vrot.lane.b32.xlu0 %v981, 127
        %v988 = vpop.permute.xlu0 %987
        %989 = vrot.lane.b32.xlu0 %v982, 127
        %v990 = vpop.permute.xlu0 %989
        %991 = vrot.lane.b32.xlu0 %v983, 127
        %v992 = vpop.permute.xlu0 %991
        %v993 = vsel %vm559, %v988, %v990
        %v994 = vsel %vm559, %v990, %v992
        %v997 = vmax.f32 %v981, %v993
        %v998 = vmax.f32 %v982, %v994
        %v999 = vadd.f32 %v981, %v993
        %v1000 = vadd.f32 %v982, %v994
        %1001 = vrot.lane.b32.xlu0 %v981, 126
        %v1002 = vpop.permute.xlu0 %1001
        %1003 = vrot.lane.b32.xlu0 %v982, 126
        %v1004 = vpop.permute.xlu0 %1003
        %1005 = vrot.lane.b32.xlu0 %v983, 126
        %v1006 = vpop.permute.xlu0 %1005
        %vm1007 = vcmask 1031168
        %v1008 = vsel %vm1007, %v1002, %v1004
        %v1009 = vsel %vm1007, %v1004, %v1006
        %v1012 = vmax.f32 %v997, %v1008
        %v1013 = vmax.f32 %v998, %v1009
        %v1014 = vadd.f32 %v999, %v1008
        %v1015 = vadd.f32 %v1000, %v1009
        %1016 = vrot.lane.b32.xlu0 %v981, 125
        %v1017 = vpop.permute.xlu0 %1016
        %1018 = vrot.lane.b32.xlu0 %v982, 125
        %v1019 = vpop.permute.xlu0 %1018
        %1020 = vrot.lane.b32.xlu0 %v983, 125
        %v1021 = vpop.permute.xlu0 %1020
        %vm1022 = vcmask 1022976
        %v1023 = vsel %vm1022, %v1017, %v1019
        %v1024 = vsel %vm1022, %v1019, %v1021
        %v1027 = vmax.f32 %v1012, %v1023
        %v1028 = vmax.f32 %v1013, %v1024
        %v1029 = vadd.f32 %v1014, %v1023
        %v1030 = vadd.f32 %v1015, %v1024
        %1031 = vst [vmem:[#allocation2 + $0x8] sm:$0xff] %v1027
        %1032 = vst [vmem:[#allocation2 + $0x10] sm:$0xff] %v1028
        %1033 = vst [vmem:[#allocation2 + $0x28] sm:$0xff] %v1029
        %1034 = vst [vmem:[#allocation2 + $0x30] sm:$0xff] %v1030
        %v1035 = vld [vmem:[#allocation2 + $0x8] sm:$0xff]
        %v1036 = vld [vmem:[#allocation2 + $0x10] sm:$0xff]
        %v1037 = vld [vmem:[#allocation2 + $0x18] sm:$0xff]
        %1041 = vrot.lane.b32.xlu0 %v1035, 112
        %v1042 = vpop.permute.xlu0 %1041
        %1043 = vrot.lane.b32.xlu0 %v1036, 112
        %v1044 = vpop.permute.xlu0 %1043
        %1045 = vrot.lane.b32.xlu0 %v1037, 112
        %v1046 = vpop.permute.xlu0 %1045
        %v1047 = vsel %vm585, %v1042, %v1044
        %v1048 = vsel %vm585, %v1044, %v1046
        %v1051 = vmax.f32 %v1027, %v1047
        %v1052 = vmax.f32 %v1028, %v1048
        %v1053 = vld [vmem:[#allocation2 + $0x28] sm:$0xff]
        %v1054 = vld [vmem:[#allocation2 + $0x30] sm:$0xff]
        %v1055 = vld [vmem:[#allocation2 + $0x38] sm:$0xff]
        %1059 = vrot.lane.b32.xlu0 %v1053, 112
        %v1060 = vpop.permute.xlu0 %1059
        %1061 = vrot.lane.b32.xlu0 %v1054, 112
        %v1062 = vpop.permute.xlu0 %1061
        %1063 = vrot.lane.b32.xlu0 %v1055, 112
        %v1064 = vpop.permute.xlu0 %1063
        %v1065 = vsel %vm585, %v1060, %v1062
        %v1066 = vsel %vm585, %v1062, %v1064
        %v1069 = vadd.f32 %v1029, %v1065
        %v1070 = vadd.f32 %v1030, %v1066
        %1071 = vrot.lane.b32.xlu0 %v1035, 96
        %v1072 = vpop.permute.xlu0 %1071
        %1073 = vrot.lane.b32.xlu0 %v1036, 96
        %v1074 = vpop.permute.xlu0 %1073
        %1075 = vrot.lane.b32.xlu0 %v1037, 96
        %v1076 = vpop.permute.xlu0 %1075
        %vm1077 = vcmask 785408
        %v1078 = vsel %vm1077, %v1072, %v1074
        %v1079 = vsel %vm1077, %v1074, %v1076
        %v1082 = vmax.f32 %v1051, %v1078
        %v1083 = vmax.f32 %v1052, %v1079
        %1084 = vrot.lane.b32.xlu0 %v1053, 96
        %v1085 = vpop.permute.xlu0 %1084
        %1086 = vrot.lane.b32.xlu0 %v1054, 96
        %v1087 = vpop.permute.xlu0 %1086
        %1088 = vrot.lane.b32.xlu0 %v1055, 96
        %v1089 = vpop.permute.xlu0 %1088
        %v1090 = vsel %vm1077, %v1085, %v1087
        %v1091 = vsel %vm1077, %v1087, %v1089
        %v1094 = vadd.f32 %v1069, %v1090
        %v1095 = vadd.f32 %v1070, %v1091
        %1096 = vrot.lane.b32.xlu0 %v1035, 80
        %v1097 = vpop.permute.xlu0 %1096
        %1098 = vrot.lane.b32.xlu0 %v1036, 80
        %v1099 = vpop.permute.xlu0 %1098
        %1100 = vrot.lane.b32.xlu0 %v1037, 80
        %v1101 = vpop.permute.xlu0 %1100
        %vm1102 = vcmask 654336
        %v1103 = vsel %vm1102, %v1097, %v1099
        %v1104 = vsel %vm1102, %v1099, %v1101
        %v1107 = vmax.f32 %v1082, %v1103
        %v1108 = vmax.f32 %v1083, %v1104
        %1109 = vrot.lane.b32.xlu0 %v1053, 80
        %v1110 = vpop.permute.xlu0 %1109
        %1111 = vrot.lane.b32.xlu0 %v1054, 80
        %v1112 = vpop.permute.xlu0 %1111
        %1113 = vrot.lane.b32.xlu0 %v1055, 80
        %v1114 = vpop.permute.xlu0 %1113
        %v1115 = vsel %vm1102, %v1110, %v1112
        %v1116 = vsel %vm1102, %v1112, %v1114
        %v1119 = vadd.f32 %v1094, %v1115
        %v1120 = vadd.f32 %v1095, %v1116
        %s1121 = sld [smem:[#allocation3]]
        %v1122 = vstv %s1121
        %v1123 = vmul.f32 %v1122, %v1107
        %v1124 = vmul.f32 %v1122, %v1108
        %s1125 = ssub.f32 1.0, %s1121
        %v1126 = vmul.f32 %v1119, 0.0625
        %v1127 = vmul.f32 %v1120, 0.0625
        %v1128 = vstv %s1125
        %v1129 = vmul.f32 %v1128, %v1126
        %v1130 = vmul.f32 %v1128, %v1127
        %v1131 = vadd.f32 %v1123, %v1129
        %v1132 = vadd.f32 %v1124, %v1130
        %1133 = vst [vmem:[#allocation2 + $0x8] sm:$0xff] %v1131
        %1134 = vst [vmem:[#allocation2 + $0x10] sm:$0xff] %v1132
        %v1135 = vld [vmem:[#allocation2 + $0x8] sm:$0xff]
        %v1136 = vld [vmem:[#allocation2 + $0x10] sm:$0xff]
        %1138 = vrot.lane.b32.xlu0 %v1135, 124
        %v1139 = vpop.permute.xlu0 %1138
        %1141 = vrot.lane.b32.xlu0 %v1135, 120
        %v1142 = vpop.permute.xlu0 %1141
        %1144 = vrot.lane.b32.xlu0 %v1135, 116
        %v1145 = vpop.permute.xlu0 %1144
        %1147 = vrot.lane.b32.xlu0 %v1135, 64
        %v1148 = vpop.permute.xlu0 %1147
        %1150 = vrot.lane.b32.xlu0 %v1135, 60
        %v1151 = vpop.permute.xlu0 %1150
        %1153 = vrot.lane.b32.xlu0 %v1135, 56
        %v1154 = vpop.permute.xlu0 %1153
        %1156 = vrot.lane.b32.xlu0 %v1135, 52
        %v1157 = vpop.permute.xlu0 %1156
        %1160 = vrot.lane.b32.xlu0 %v1136, 124
        %v1161 = vpop.permute.xlu0 %1160
        %1163 = vrot.lane.b32.xlu0 %v1136, 120
        %v1164 = vpop.permute.xlu0 %1163
        %1166 = vrot.lane.b32.xlu0 %v1136, 116
        %v1167 = vpop.permute.xlu0 %1166
        %1169 = vrot.lane.b32.xlu0 %v1136, 64
        %v1170 = vpop.permute.xlu0 %1169
        %1172 = vrot.lane.b32.xlu0 %v1136, 60
        %v1173 = vpop.permute.xlu0 %1172
        %1175 = vrot.lane.b32.xlu0 %v1136, 56
        %v1176 = vpop.permute.xlu0 %1175
        %1178 = vrot.lane.b32.xlu0 %v1136, 52
        %v1179 = vpop.permute.xlu0 %1178
        %v1181 = vpack.c.bf16 %v1139, %v1135
        %v1182 = vpack.c.bf16 %v1145, %v1142
        %v1183 = vpack.c.bf16 %v1151, %v1148
        %v1184 = vpack.c.bf16 %v1157, %v1154
        %v1185 = vpack.c.bf16 %v1161, %v1136
        %v1186 = vpack.c.bf16 %v1167, %v1164
        %v1187 = vpack.c.bf16 %v1173, %v1170
        %v1188 = vpack.c.bf16 %v1179, %v1176
        %v1189 = vld [vmem:[%s9] sm:$0xf]
        %v1190 = vld [vmem:[%s9 + $0x4] sm:$0x1]
        %v1191 = vld [vmem:[%s10] sm:$0xff]
        %v1192 = vld [vmem:[%s10 + $0x8] sm:$0x3]
        %v1195 = vunpack.c.l.b16 %v1189
        %v1196 = vunpack.c.l.b16 %v1190
        %v1197 = vpack.c.b16 %v1196, %v1195
        %1199 = vmatpush.bf16.msra.mxu0 %v1188
        %1200 = vmatpush.bf16.msra.mxu0 %v1187
        %1201 = vmatpush.bf16.msra.mxu0 %v1186
        %1202 = vmatpush.bf16.msra.mxu0 %v1185
        %1203 = vmatpush.bf16.msra.mxu0 %v1184
        %1204 = vmatpush.bf16.msra.mxu0 %v1183
        %1205 = vmatpush.bf16.msra.mxu0 %v1182
        %1206 = vmatpush.bf16.msra.mxu0 %v1181
        %1207 = vmatmul.bf16.gmra.mxu0 %v1197
        %v1208 = vpop.f32.mrf.mxu0
        %v1209 = vadd.f32 %v1191, %v1208
        %v1210 = vpop.f32.mrf.mxu0
        %v1211 = vadd.f32 %v1192, %v1210
        %1212 = vdwg.mxu0
        %1213 = vst.msk [vmem:[%s408] sm:$0xff] %vm542, %v1209
        %vm1214 = vcmask 1024
        %1215 = vst.msk [vmem:[%s408 + $0x8] sm:$0x3] %vm1214, %v1211
        %p1216 = scmp.lt.s32.totalorder %s26, 1
        %s1217 = scalar_select %p1216, %s26, 1
        %s1218 = smul.addr %s1217, 2
        %s1219 = smul.addr %s1218, 8
        %s1220 = scalar_lea.vmem %s11, %s1219
        // Predicated region
        $region69: #{tpu_custom_call.1} parent=63 // pred_check
          %p1221 = pneg %p280
        $region70: #{tpu_custom_call.1} parent=63 // pred_check_branch
          %1223 = sbr.rel (%p1221) target = $region72
        $region71: #{tpu_custom_call.1} parent=63 // pred_region
          _
        $region72: #{tpu_custom_call.1} parent=63 // pred_fallthru
          _
      $region64: #{tpu_custom_call.1} parent=5 // pred_fallthru
        _
      %p1224 = scmp.le.s32.totalorder 2, %s21
      // Predicated region
      $region73: #{tpu_custom_call.1} parent=5 // pred_check
        %p1225 = pneg %p1224
      $region74: #{tpu_custom_call.1} parent=5 // pred_check_branch
        %1227 = sbr.rel (%p1225) target = $region76
      $region75: #{tpu_custom_call.1} parent=5 // pred_region
        %s1228 = ssub.s32 %s21, 2
        // Predicated region
        $region77: #{tpu_custom_call.1} parent=75 // pred_check
          %p1229 = pneg %p286
        $region78: #{tpu_custom_call.1} parent=75 // pred_check_branch
          %1231 = sbr.rel (%p1229) target = $region80
        $region79: #{tpu_custom_call.1} parent=75 // pred_region
          %p1232 = scmp.lt.s32.totalorder %s27, 1
          %s1233 = scalar_select %p1232, %s27, 1
          %s1234 = smul.addr %s1233, 2
          %s1235 = smul.addr %s1234, 8
          %s1236 = scalar_lea.vmem %s11, %s1235
        $region80: #{tpu_custom_call.1} parent=75 // pred_fallthru
          _
      $region76: #{tpu_custom_call.1} parent=5 // pred_fallthru
        _
    $region6: #{tpu_custom_call.1} parent=1 // loop_footer
      %s25 = sadd.s32 1, %s21
    $region7: #{tpu_custom_call.1} parent=1 // loop_footer_branch
      %20 = sbr.rel target = $region3
    $region8: #{tpu_custom_call.1} parent=1 // loop_exit
      _
    %1237 = vsyncpa [#allocation5], 1
    %s1238 = scalar_lea.sflag [#allocation5], 1
    %1239 = vsyncpa %s1238, 1

</llo_original>
